<compile_context>
chip_gen: v7x
topology: tpu7x:2x2x1
jax: 0.10.0
libtpu: 0.0.40
codegen_flags: <defaults>
</compile_context>

<pallas_src>
import functools

import jax
import jax.numpy as jnp
from jax.experimental import pallas as pl
from jax.experimental.pallas import tpu as pltpu


def _bfm_kernel(x1_ref, x2_ref, w_ref, b_ref, out_ref, prod_pad,
                *, H, W, C, Cpad, TH):
    # x1_ref / x2_ref : (H, W, C) f32  — full image, VMEM-resident across the
    #                   row-tile axis (constant index_map over t).
    # w_ref           : (9, C, Cpad) bf16 — BN-scale-folded conv taps, resident.
    # b_ref           : (1, Cpad)    f32  — folded BN bias, resident.
    # out_ref         : (TH, W, Cpad) bf16 — this row tile's output.
    # prod_pad        : VMEM (TH+2, W+2, C) f32 — zero-padded product tile.
    t = pl.program_id(1)
    last_t = pl.num_programs(1) - 1
    row0 = pl.multiple_of(t * TH, TH)            # first output row of this tile

    # ---- Build the zero-padded product tile in VMEM -----------------------
    # Halo columns: zeroed every step (cheap, O(TH*C)); megacore-safe because
    # every core zeroes its own scratch before using it.
    zcol = jnp.zeros((TH + 2, 1, C), jnp.float32)
    prod_pad[:, 0:1, :] = zcol
    prod_pad[:, W + 1:W + 2, :] = zcol

    # Interior rows: fused elementwise product of the TH rows owned by this
    # tile (kept in f32 on the VPU).
    prod_pad[1:TH + 1, 1:W + 1, :] = (
        x1_ref[pl.ds(row0, TH), :, :] * x2_ref[pl.ds(row0, TH), :, :])

    # Top halo row: neighbouring image row (row0 - 1), or zeros on the border.
    @pl.when(t == 0)
    def _():
        prod_pad[0:1, 1:W + 1, :] = jnp.zeros((1, W, C), jnp.float32)

    @pl.when(t > 0)
    def _():
        prod_pad[0:1, 1:W + 1, :] = (
            x1_ref[pl.ds(row0 - 1, 1), :, :] * x2_ref[pl.ds(row0 - 1, 1), :, :])

    # Bottom halo row: neighbouring image row (row0 + TH), or zeros.
    @pl.when(t == last_t)
    def _():
        prod_pad[TH + 1:TH + 2, 1:W + 1, :] = jnp.zeros((1, W, C), jnp.float32)

    @pl.when(t < last_t)
    def _():
        prod_pad[TH + 1:TH + 2, 1:W + 1, :] = (
            x1_ref[pl.ds(row0 + TH, 1), :, :] * x2_ref[pl.ds(row0 + TH, 1), :, :])

    # ---- 3x3 conv: 9 accumulated MXU dots (K = C), bf16 operands, f32 acc --
    acc = None
    for dy in range(3):
        for dx in range(3):
            tap = prod_pad[dy:dy + TH, dx:dx + W, :]          # (TH, W, C), static
            tap = tap.reshape(TH * W, C).astype(jnp.bfloat16)
            part = jnp.dot(tap, w_ref[dy * 3 + dx],
                           preferred_element_type=jnp.float32)
            acc = part if acc is None else acc + part

    # Folded-BN bias + ReLU in f32, then one lane-dense bf16 store.
    y = jnp.maximum(acc + b_ref[...], 0.0)
    out_ref[...] = y.reshape(TH, W, Cpad).astype(out_ref.dtype)


def _pick_vmem_limit():
    """Generation-aware scoped-VMEM limit (v5e/v6e: 128 MiB phys, v7x: 64)."""
    try:
        cap = int(pltpu.get_tpu_info().vmem_capacity_bytes)
    except Exception:
        cap = 64 * 1024 * 1024
    return int(min(96 * 1024 * 1024, (cap * 3) // 4))


def _pick_tile_h(H, W, C, Cpad, vmem_limit):
    """Largest row tile (dividing H) whose per-step working set fits VMEM."""
    fixed = (2 * 2 * H * W * C * 4            # x1, x2 full-image blocks, 2 bufs
             + 9 * C * Cpad * 2 + Cpad * 4)   # resident folded weight + bias
    budget = max(vmem_limit - fixed, vmem_limit // 8) // 3
    for th in range(H, 0, -1):
        if H % th:
            continue
        per_tile = ((th + 2) * (W + 2) * C * 4     # padded-product scratch (f32)
                    + th * W * Cpad * 4            # f32 accumulator temp
                    + 2 * th * W * Cpad * 2)       # double-buffered bf16 output
        if per_tile <= budget:
            return th
    return 1


def bfm_forward_nhwc(x1, x2, w_oihw, gamma, beta, running_mean, running_var,
                     eps=1e-5, tile_h=None):
    """BFM forward. x1, x2 are NHWC float32; conv weight is (Cout, Cin, 3, 3).

    Returns NHWC float32 (same layout in and out — no wrapper transposes).
    """
    B, H, W, C = x1.shape
    Cpad = ((C + 127) // 128) * 128

    vmem_limit = _pick_vmem_limit()
    if tile_h is None:
        tile_h = _pick_tile_h(H, W, C, Cpad, vmem_limit)
    assert H % tile_h == 0, (H, tile_h)
    n_row_tiles = H // tile_h

    # Fold BatchNorm (inference mode) into the conv weight and one bias vector.
    inv_std = 1.0 / jnp.sqrt(running_var.astype(jnp.float32) + eps)
    scale = gamma.astype(jnp.float32) * inv_std                          # (C,)
    bias = beta.astype(jnp.float32) - running_mean.astype(jnp.float32) * scale
    bias = jnp.pad(bias, (0, Cpad - C)).reshape(1, Cpad)                 # (1, Cpad)

    # (Cout, Cin, 3, 3) -> (3, 3, Cin, Cout), BN scale folded per Cout,
    # tap-major (9, Cin, Cout), zero-padded to a lane-dense Cpad, cast bf16.
    w_hwio = jnp.transpose(w_oihw, (2, 3, 1, 0)).astype(jnp.float32)
    w_taps = (w_hwio * scale[None, None, None, :]).reshape(9, C, C)
    w_taps = jnp.pad(w_taps, ((0, 0), (0, 0), (0, Cpad - C))).astype(jnp.bfloat16)

    kernel = functools.partial(_bfm_kernel, H=H, W=W, C=C, Cpad=Cpad, TH=tile_h)

    out_pad = pl.pallas_call(
        kernel,
        out_shape=jax.ShapeDtypeStruct((B, H, W, Cpad), jnp.bfloat16),
        grid_spec=pltpu.PrefetchScalarGridSpec(
            num_scalar_prefetch=0,
            grid=(B, n_row_tiles),
            in_specs=[
                # Full-image input blocks; constant over the row-tile axis so
                # they stay VMEM-resident while one batch element is tiled.
                pl.BlockSpec((None, H, W, C), lambda b, t: (b, 0, 0, 0)),
                pl.BlockSpec((None, H, W, C), lambda b, t: (b, 0, 0, 0)),
                # Weight / bias: constant index_maps -> fetched once, resident.
                pl.BlockSpec((9, C, Cpad), lambda b, t: (0, 0, 0)),
                pl.BlockSpec((1, Cpad), lambda b, t: (0, 0)),
            ],
            out_specs=pl.BlockSpec((None, tile_h, W, Cpad),
                                   lambda b, t: (b, t, 0, 0)),
            scratch_shapes=[
                pltpu.VMEM((tile_h + 2, W + 2, C), jnp.float32),
            ],
        ),
        compiler_params=pltpu.CompilerParams(
            dimension_semantics=("parallel", "parallel"),
            vmem_limit_bytes=vmem_limit,
        ),
    )(x1, x2, w_taps, bias)

    # TODO(synk): a full NHWC CTDNet would keep the lane-padded bf16
    #             activations; slice + f32 cast here only to match BFM's API.
    return out_pad[..., :C].astype(jnp.float32)


if __name__ == "__main__":
    key = jax.random.PRNGKey(0)
    k_x1, k_x2, k_w, k_g, k_b, k_m, k_v = jax.random.split(key, 7)

    B, C, H, W = 2, 4, 16, 16

    x1 = jax.random.normal(k_x1, (B, H, W, C), dtype=jnp.float32)
    x2 = jax.random.normal(k_x2, (B, H, W, C), dtype=jnp.float32)

    # conv_1: Conv2d(C, C, 3x3, pad=1, bias=False), kaiming_normal fan_in.
    fan_in = C * 3 * 3
    w = jax.random.normal(k_w, (C, C, 3, 3), dtype=jnp.float32) * jnp.sqrt(2.0 / fan_in)
    # bn_1: non-trivial (post-training-style) statistics to exercise the fold.
    gamma = 1.0 + 0.1 * jax.random.normal(k_g, (C,), dtype=jnp.float32)
    beta = 0.05 * jax.random.normal(k_b, (C,), dtype=jnp.float32)
    running_mean = 0.1 * jax.random.normal(k_m, (C,), dtype=jnp.float32)
    running_var = 0.5 + jax.random.uniform(k_v, (C,), dtype=jnp.float32)

    # tile_h=8 -> grid (B, 2): exercises the halo-row branches of the kernel.
    out = bfm_forward_nhwc(x1, x2, w, gamma, beta, running_mean, running_var,
                           tile_h=8)
    out = jax.block_until_ready(out)
    assert out.shape == (B, H, W, C), out.shape

    # Pure-JAX NHWC reference (f32 conv).  Tolerances are intentionally sized
    # for the kernel's bf16 MXU operands and bf16 output (~1e-2-scale abs
    # error); a structural bug (missing tap / bad halo) is O(1e-1..1).
    prod = x1 * x2
    w_hwio = jnp.transpose(w, (2, 3, 1, 0))
    conv = jax.lax.conv_general_dilated(
        prod, w_hwio, window_strides=(1, 1), padding="SAME",
        dimension_numbers=("NHWC", "HWIO", "NHWC"))
    inv_std = 1.0 / jnp.sqrt(running_var + 1e-5)
    ref = jnp.maximum((conv - running_mean) * (gamma * inv_std) + beta, 0.0)

    err = jnp.abs(out - ref)
    max_err = float(jnp.max(err))
    mean_err = float(jnp.mean(err))
    assert max_err < 1e-1, f"max abs err {max_err}"
    assert mean_err < 1e-2, f"mean abs err {mean_err}"

    print("KERNEL_OK")
</pallas_src>

<mosaic_0001>
module attributes {stable_mosaic.version = 11 : i64} {
  func.func @_bfm_kernel(%arg0: i32, %arg1: i32, %arg2: memref<1x16x16x4xf32, #tpu.memory_space<vmem>>, %arg3: memref<1x16x16x4xf32, #tpu.memory_space<vmem>>, %arg4: memref<9x4x128xbf16, #tpu.memory_space<vmem>>, %arg5: memref<1x128xf32, #tpu.memory_space<vmem>>, %arg6: memref<1x8x16x128xbf16, #tpu.memory_space<vmem>>, %arg7: memref<10x18x4xf32, #tpu.memory_space<vmem>>) attributes {dimension_semantics = [#tpu.dimension_semantics<parallel>, #tpu.dimension_semantics<parallel>], iteration_bounds = array<i64: 2, 2>, scalar_prefetch = 0 : i64, scratch_operands = 1 : i64, tpu.core_type = #tpu.core_type<tc>, window_params = [{transform_indices = @transform_0, window_bounds = array<i64: 1, 16, 16, 4>}, {transform_indices = @transform_1, window_bounds = array<i64: 1, 16, 16, 4>}, {pipeline_mode = #tpu.pipeline_mode<synchronous>, transform_indices = @transform_2, window_bounds = array<i64: 9, 4, 128>}, {pipeline_mode = #tpu.pipeline_mode<synchronous>, transform_indices = @transform_3, window_bounds = array<i64: 1, 128>}, {transform_indices = @transform_4, window_bounds = array<i64: 1, 8, 16, 128>}]} {
    %c8_i32 = arith.constant 8 : i32
    %0 = arith.muli %arg1, %c8_i32 : i32
    %1 = tpu.assume_multiple %0, 8 : i32
    %cst = arith.constant 0.000000e+00 : f32
    %2 = vector.broadcast %cst : f32 to vector<10x1x4xf32>
    %c0 = arith.constant 0 : index
    %c0_0 = arith.constant 0 : index
    %c0_1 = arith.constant 0 : index
    %3 = vector.load %arg7[%c0, %c0_0, %c0_1] : memref<10x18x4xf32, #tpu.memory_space<vmem>>, vector<10x1x4xf32>
    tpu.vector_store %arg7[%c0, %c0_0, %c0_1], %2 {strides = array<i32>} : memref<10x18x4xf32, #tpu.memory_space<vmem>>, vector<10x1x4xf32>,
    %c0_2 = arith.constant 0 : index
    %c17 = arith.constant 17 : index
    %c0_3 = arith.constant 0 : index
    %4 = vector.load %arg7[%c0_2, %c17, %c0_3] : memref<10x18x4xf32, #tpu.memory_space<vmem>>, vector<10x1x4xf32>
    tpu.vector_store %arg7[%c0_2, %c17, %c0_3], %2 {strides = array<i32>} : memref<10x18x4xf32, #tpu.memory_space<vmem>>, vector<10x1x4xf32>,
    %c0_4 = arith.constant 0 : index
    %5 = arith.index_cast %1 : i32 to index
    %c0_5 = arith.constant 0 : index
    %c0_6 = arith.constant 0 : index
    %6 = vector.load %arg2[%c0_4, %5, %c0_5, %c0_6] : memref<1x16x16x4xf32, #tpu.memory_space<vmem>>, vector<1x8x16x4xf32>
    %7 = vector.shape_cast %6 : vector<1x8x16x4xf32> to vector<8x16x4xf32>
    %c0_7 = arith.constant 0 : index
    %8 = arith.index_cast %1 : i32 to index
    %c0_8 = arith.constant 0 : index
    %c0_9 = arith.constant 0 : index
    %9 = vector.load %arg3[%c0_7, %8, %c0_8, %c0_9] : memref<1x16x16x4xf32, #tpu.memory_space<vmem>>, vector<1x8x16x4xf32>
    %10 = vector.shape_cast %9 : vector<1x8x16x4xf32> to vector<8x16x4xf32>
    %11 = arith.mulf %7, %10 : vector<8x16x4xf32>
    %c1 = arith.constant 1 : index
    %c1_10 = arith.constant 1 : index
    %c0_11 = arith.constant 0 : index
    %12 = vector.load %arg7[%c1, %c1_10, %c0_11] : memref<10x18x4xf32, #tpu.memory_space<vmem>>, vector<8x16x4xf32>
    tpu.vector_store %arg7[%c1, %c1_10, %c0_11], %11 {strides = array<i32>} : memref<10x18x4xf32, #tpu.memory_space<vmem>>, vector<8x16x4xf32>,
    %c0_i32 = arith.constant 0 : i32
    %13 = arith.cmpi eq, %arg1, %c0_i32 : i32
    %14 = arith.extui %13 : i1 to i32
    %c0_i32_12 = arith.constant 0 : i32
    %15 = arith.cmpi ne, %14, %c0_i32_12 : i32
    scf.if %15 {
      %cst_81 = arith.constant 0.000000e+00 : f32
      %97 = vector.broadcast %cst_81 : f32 to vector<1x16x4xf32>
      %c0_82 = arith.constant 0 : index
      %c1_83 = arith.constant 1 : index
      %c0_84 = arith.constant 0 : index
      %98 = vector.load %arg7[%c0_82, %c1_83, %c0_84] : memref<10x18x4xf32, #tpu.memory_space<vmem>>, vector<1x16x4xf32>
      tpu.vector_store %arg7[%c0_82, %c1_83, %c0_84], %97 {strides = array<i32>} : memref<10x18x4xf32, #tpu.memory_space<vmem>>, vector<1x16x4xf32>,
    } else {
    }
    %c0_i32_13 = arith.constant 0 : i32
    %16 = arith.cmpi sgt, %arg1, %c0_i32_13 : i32
    %17 = arith.extui %16 : i1 to i32
    %c0_i32_14 = arith.constant 0 : i32
    %18 = arith.cmpi ne, %17, %c0_i32_14 : i32
    scf.if %18 {
      %c1_i32_81 = arith.constant 1 : i32
      %97 = arith.subi %1, %c1_i32_81 : i32
      %c0_82 = arith.constant 0 : index
      %98 = arith.index_cast %97 : i32 to index
      %c0_83 = arith.constant 0 : index
      %c0_84 = arith.constant 0 : index
      %99 = vector.load %arg2[%c0_82, %98, %c0_83, %c0_84] : memref<1x16x16x4xf32, #tpu.memory_space<vmem>>, vector<1x1x16x4xf32>
      %100 = vector.shape_cast %99 : vector<1x1x16x4xf32> to vector<1x16x4xf32>
      %c1_i32_85 = arith.constant 1 : i32
      %101 = arith.subi %1, %c1_i32_85 : i32
      %c0_86 = arith.constant 0 : index
      %102 = arith.index_cast %101 : i32 to index
      %c0_87 = arith.constant 0 : index
      %c0_88 = arith.constant 0 : index
      %103 = vector.load %arg3[%c0_86, %102, %c0_87, %c0_88] : memref<1x16x16x4xf32, #tpu.memory_space<vmem>>, vector<1x1x16x4xf32>
      %104 = vector.shape_cast %103 : vector<1x1x16x4xf32> to vector<1x16x4xf32>
      %105 = arith.mulf %100, %104 : vector<1x16x4xf32>
      %c0_89 = arith.constant 0 : index
      %c1_90 = arith.constant 1 : index
      %c0_91 = arith.constant 0 : index
      %106 = vector.load %arg7[%c0_89, %c1_90, %c0_91] : memref<10x18x4xf32, #tpu.memory_space<vmem>>, vector<1x16x4xf32>
      tpu.vector_store %arg7[%c0_89, %c1_90, %c0_91], %105 {strides = array<i32>} : memref<10x18x4xf32, #tpu.memory_space<vmem>>, vector<1x16x4xf32>,
    } else {
    }
    %c1_i32 = arith.constant 1 : i32
    %19 = arith.cmpi eq, %arg1, %c1_i32 : i32
    %20 = arith.extui %19 : i1 to i32
    %c0_i32_15 = arith.constant 0 : i32
    %21 = arith.cmpi ne, %20, %c0_i32_15 : i32
    scf.if %21 {
      %cst_81 = arith.constant 0.000000e+00 : f32
      %97 = vector.broadcast %cst_81 : f32 to vector<1x16x4xf32>
      %c9 = arith.constant 9 : index
      %c1_82 = arith.constant 1 : index
      %c0_83 = arith.constant 0 : index
      %98 = vector.load %arg7[%c9, %c1_82, %c0_83] : memref<10x18x4xf32, #tpu.memory_space<vmem>>, vector<1x16x4xf32>
      tpu.vector_store %arg7[%c9, %c1_82, %c0_83], %97 {strides = array<i32>} : memref<10x18x4xf32, #tpu.memory_space<vmem>>, vector<1x16x4xf32>,
    } else {
    }
    %c1_i32_16 = arith.constant 1 : i32
    %22 = arith.cmpi slt, %arg1, %c1_i32_16 : i32
    %23 = arith.extui %22 : i1 to i32
    %c0_i32_17 = arith.constant 0 : i32
    %24 = arith.cmpi ne, %23, %c0_i32_17 : i32
    scf.if %24 {
      %c8_i32_81 = arith.constant 8 : i32
      %97 = arith.addi %1, %c8_i32_81 : i32
      %c0_82 = arith.constant 0 : index
      %98 = arith.index_cast %97 : i32 to index
      %c0_83 = arith.constant 0 : index
      %c0_84 = arith.constant 0 : index
      %99 = vector.load %arg2[%c0_82, %98, %c0_83, %c0_84] : memref<1x16x16x4xf32, #tpu.memory_space<vmem>>, vector<1x1x16x4xf32>
      %100 = vector.shape_cast %99 : vector<1x1x16x4xf32> to vector<1x16x4xf32>
      %c8_i32_85 = arith.constant 8 : i32
      %101 = arith.addi %1, %c8_i32_85 : i32
      %c0_86 = arith.constant 0 : index
      %102 = arith.index_cast %101 : i32 to index
      %c0_87 = arith.constant 0 : index
      %c0_88 = arith.constant 0 : index
      %103 = vector.load %arg3[%c0_86, %102, %c0_87, %c0_88] : memref<1x16x16x4xf32, #tpu.memory_space<vmem>>, vector<1x1x16x4xf32>
      %104 = vector.shape_cast %103 : vector<1x1x16x4xf32> to vector<1x16x4xf32>
      %105 = arith.mulf %100, %104 : vector<1x16x4xf32>
      %c9 = arith.constant 9 : index
      %c1_89 = arith.constant 1 : index
      %c0_90 = arith.constant 0 : index
      %106 = vector.load %arg7[%c9, %c1_89, %c0_90] : memref<10x18x4xf32, #tpu.memory_space<vmem>>, vector<1x16x4xf32>
      tpu.vector_store %arg7[%c9, %c1_89, %c0_90], %105 {strides = array<i32>} : memref<10x18x4xf32, #tpu.memory_space<vmem>>, vector<1x16x4xf32>,
    } else {
    }
    %c0_18 = arith.constant 0 : index
    %c0_19 = arith.constant 0 : index
    %c0_20 = arith.constant 0 : index
    %25 = vector.load %arg7[%c0_18, %c0_19, %c0_20] : memref<10x18x4xf32, #tpu.memory_space<vmem>>, vector<8x16x4xf32>
    %26 = vector.shape_cast %25 : vector<8x16x4xf32> to vector<128x4xf32>
    %27 = arith.truncf %26 : vector<128x4xf32> to vector<128x4xbf16>
    %c0_21 = arith.constant 0 : index
    %c0_22 = arith.constant 0 : index
    %c0_23 = arith.constant 0 : index
    %28 = vector.load %arg4[%c0_21, %c0_22, %c0_23] : memref<9x4x128xbf16, #tpu.memory_space<vmem>>, vector<1x4x128xbf16>
    %29 = vector.shape_cast %28 : vector<1x4x128xbf16> to vector<4x128xbf16>
    %cst_24 = arith.constant dense<0.000000e+00> : vector<128x128xf32>
    %30 = tpu.matmul %27, %29, %cst_24 {dimension_numbers = #tpu.dot_dimension_numbers<[1], [0], [0], [1], [0, 0, 1, 1], [], []>} : vector<128x4xbf16>, vector<4x128xbf16>, vector<128x128xf32> -> vector<128x128xf32>
    %c0_25 = arith.constant 0 : index
    %c1_26 = arith.constant 1 : index
    %c0_27 = arith.constant 0 : index
    %31 = vector.load %arg7[%c0_25, %c1_26, %c0_27] : memref<10x18x4xf32, #tpu.memory_space<vmem>>, vector<8x16x4xf32>
    %32 = vector.shape_cast %31 : vector<8x16x4xf32> to vector<128x4xf32>
    %33 = arith.truncf %32 : vector<128x4xf32> to vector<128x4xbf16>
    %c1_28 = arith.constant 1 : index
    %c0_29 = arith.constant 0 : index
    %c0_30 = arith.constant 0 : index
    %34 = vector.load %arg4[%c1_28, %c0_29, %c0_30] : memref<9x4x128xbf16, #tpu.memory_space<vmem>>, vector<1x4x128xbf16>
    %35 = vector.shape_cast %34 : vector<1x4x128xbf16> to vector<4x128xbf16>
    %cst_31 = arith.constant dense<0.000000e+00> : vector<128x128xf32>
    %36 = tpu.matmul %33, %35, %cst_31 {dimension_numbers = #tpu.dot_dimension_numbers<[1], [0], [0], [1], [0, 0, 1, 1], [], []>} : vector<128x4xbf16>, vector<4x128xbf16>, vector<128x128xf32> -> vector<128x128xf32>
    %37 = arith.addf %30, %36 : vector<128x128xf32>
    %c0_32 = arith.constant 0 : index
    %c2 = arith.constant 2 : index
    %c0_33 = arith.constant 0 : index
    %38 = vector.load %arg7[%c0_32, %c2, %c0_33] : memref<10x18x4xf32, #tpu.memory_space<vmem>>, vector<8x16x4xf32>
    %39 = vector.shape_cast %38 : vector<8x16x4xf32> to vector<128x4xf32>
    %40 = arith.truncf %39 : vector<128x4xf32> to vector<128x4xbf16>
    %c2_34 = arith.constant 2 : index
    %c0_35 = arith.constant 0 : index
    %c0_36 = arith.constant 0 : index
    %41 = vector.load %arg4[%c2_34, %c0_35, %c0_36] : memref<9x4x128xbf16, #tpu.memory_space<vmem>>, vector<1x4x128xbf16>
    %42 = vector.shape_cast %41 : vector<1x4x128xbf16> to vector<4x128xbf16>
    %cst_37 = arith.constant dense<0.000000e+00> : vector<128x128xf32>
    %43 = tpu.matmul %40, %42, %cst_37 {dimension_numbers = #tpu.dot_dimension_numbers<[1], [0], [0], [1], [0, 0, 1, 1], [], []>} : vector<128x4xbf16>, vector<4x128xbf16>, vector<128x128xf32> -> vector<128x128xf32>
    %44 = arith.addf %37, %43 : vector<128x128xf32>
    %c1_38 = arith.constant 1 : index
    %c0_39 = arith.constant 0 : index
    %c0_40 = arith.constant 0 : index
    %45 = vector.load %arg7[%c1_38, %c0_39, %c0_40] : memref<10x18x4xf32, #tpu.memory_space<vmem>>, vector<8x16x4xf32>
    %46 = vector.shape_cast %45 : vector<8x16x4xf32> to vector<128x4xf32>
    %47 = arith.truncf %46 : vector<128x4xf32> to vector<128x4xbf16>
    %c3 = arith.constant 3 : index
    %c0_41 = arith.constant 0 : index
    %c0_42 = arith.constant 0 : index
    %48 = vector.load %arg4[%c3, %c0_41, %c0_42] : memref<9x4x128xbf16, #tpu.memory_space<vmem>>, vector<1x4x128xbf16>
    %49 = vector.shape_cast %48 : vector<1x4x128xbf16> to vector<4x128xbf16>
    %cst_43 = arith.constant dense<0.000000e+00> : vector<128x128xf32>
    %50 = tpu.matmul %47, %49, %cst_43 {dimension_numbers = #tpu.dot_dimension_numbers<[1], [0], [0], [1], [0, 0, 1, 1], [], []>} : vector<128x4xbf16>, vector<4x128xbf16>, vector<128x128xf32> -> vector<128x128xf32>
    %51 = arith.addf %44, %50 : vector<128x128xf32>
    %c1_44 = arith.constant 1 : index
    %c1_45 = arith.constant 1 : index
    %c0_46 = arith.constant 0 : index
    %52 = vector.load %arg7[%c1_44, %c1_45, %c0_46] : memref<10x18x4xf32, #tpu.memory_space<vmem>>, vector<8x16x4xf32>
    %53 = vector.shape_cast %52 : vector<8x16x4xf32> to vector<128x4xf32>
    %54 = arith.truncf %53 : vector<128x4xf32> to vector<128x4xbf16>
    %c4 = arith.constant 4 : index
    %c0_47 = arith.constant 0 : index
    %c0_48 = arith.constant 0 : index
    %55 = vector.load %arg4[%c4, %c0_47, %c0_48] : memref<9x4x128xbf16, #tpu.memory_space<vmem>>, vector<1x4x128xbf16>
    %56 = vector.shape_cast %55 : vector<1x4x128xbf16> to vector<4x128xbf16>
    %cst_49 = arith.constant dense<0.000000e+00> : vector<128x128xf32>
    %57 = tpu.matmul %54, %56, %cst_49 {dimension_numbers = #tpu.dot_dimension_numbers<[1], [0], [0], [1], [0, 0, 1, 1], [], []>} : vector<128x4xbf16>, vector<4x128xbf16>, vector<128x128xf32> -> vector<128x128xf32>
    %58 = arith.addf %51, %57 : vector<128x128xf32>
    %c1_50 = arith.constant 1 : index
    %c2_51 = arith.constant 2 : index
    %c0_52 = arith.constant 0 : index
    %59 = vector.load %arg7[%c1_50, %c2_51, %c0_52] : memref<10x18x4xf32, #tpu.memory_space<vmem>>, vector<8x16x4xf32>
    %60 = vector.shape_cast %59 : vector<8x16x4xf32> to vector<128x4xf32>
    %61 = arith.truncf %60 : vector<128x4xf32> to vector<128x4xbf16>
    %c5 = arith.constant 5 : index
    %c0_53 = arith.constant 0 : index
    %c0_54 = arith.constant 0 : index
    %62 = vector.load %arg4[%c5, %c0_53, %c0_54] : memref<9x4x128xbf16, #tpu.memory_space<vmem>>, vector<1x4x128xbf16>
    %63 = vector.shape_cast %62 : vector<1x4x128xbf16> to vector<4x128xbf16>
    %cst_55 = arith.constant dense<0.000000e+00> : vector<128x128xf32>
    %64 = tpu.matmul %61, %63, %cst_55 {dimension_numbers = #tpu.dot_dimension_numbers<[1], [0], [0], [1], [0, 0, 1, 1], [], []>} : vector<128x4xbf16>, vector<4x128xbf16>, vector<128x128xf32> -> vector<128x128xf32>
    %65 = arith.addf %58, %64 : vector<128x128xf32>
    %c2_56 = arith.constant 2 : index
    %c0_57 = arith.constant 0 : index
    %c0_58 = arith.constant 0 : index
    %66 = vector.load %arg7[%c2_56, %c0_57, %c0_58] : memref<10x18x4xf32, #tpu.memory_space<vmem>>, vector<8x16x4xf32>
    %67 = vector.shape_cast %66 : vector<8x16x4xf32> to vector<128x4xf32>
    %68 = arith.truncf %67 : vector<128x4xf32> to vector<128x4xbf16>
    %c6 = arith.constant 6 : index
    %c0_59 = arith.constant 0 : index
    %c0_60 = arith.constant 0 : index
    %69 = vector.load %arg4[%c6, %c0_59, %c0_60] : memref<9x4x128xbf16, #tpu.memory_space<vmem>>, vector<1x4x128xbf16>
    %70 = vector.shape_cast %69 : vector<1x4x128xbf16> to vector<4x128xbf16>
    %cst_61 = arith.constant dense<0.000000e+00> : vector<128x128xf32>
    %71 = tpu.matmul %68, %70, %cst_61 {dimension_numbers = #tpu.dot_dimension_numbers<[1], [0], [0], [1], [0, 0, 1, 1], [], []>} : vector<128x4xbf16>, vector<4x128xbf16>, vector<128x128xf32> -> vector<128x128xf32>
    %72 = arith.addf %65, %71 : vector<128x128xf32>
    %c2_62 = arith.constant 2 : index
    %c1_63 = arith.constant 1 : index
    %c0_64 = arith.constant 0 : index
    %73 = vector.load %arg7[%c2_62, %c1_63, %c0_64] : memref<10x18x4xf32, #tpu.memory_space<vmem>>, vector<8x16x4xf32>
    %74 = vector.shape_cast %73 : vector<8x16x4xf32> to vector<128x4xf32>
    %75 = arith.truncf %74 : vector<128x4xf32> to vector<128x4xbf16>
    %c7 = arith.constant 7 : index
    %c0_65 = arith.constant 0 : index
    %c0_66 = arith.constant 0 : index
    %76 = vector.load %arg4[%c7, %c0_65, %c0_66] : memref<9x4x128xbf16, #tpu.memory_space<vmem>>, vector<1x4x128xbf16>
    %77 = vector.shape_cast %76 : vector<1x4x128xbf16> to vector<4x128xbf16>
    %cst_67 = arith.constant dense<0.000000e+00> : vector<128x128xf32>
    %78 = tpu.matmul %75, %77, %cst_67 {dimension_numbers = #tpu.dot_dimension_numbers<[1], [0], [0], [1], [0, 0, 1, 1], [], []>} : vector<128x4xbf16>, vector<4x128xbf16>, vector<128x128xf32> -> vector<128x128xf32>
    %79 = arith.addf %72, %78 : vector<128x128xf32>
    %c2_68 = arith.constant 2 : index
    %c2_69 = arith.constant 2 : index
    %c0_70 = arith.constant 0 : index
    %80 = vector.load %arg7[%c2_68, %c2_69, %c0_70] : memref<10x18x4xf32, #tpu.memory_space<vmem>>, vector<8x16x4xf32>
    %81 = vector.shape_cast %80 : vector<8x16x4xf32> to vector<128x4xf32>
    %82 = arith.truncf %81 : vector<128x4xf32> to vector<128x4xbf16>
    %c8 = arith.constant 8 : index
    %c0_71 = arith.constant 0 : index
    %c0_72 = arith.constant 0 : index
    %83 = vector.load %arg4[%c8, %c0_71, %c0_72] : memref<9x4x128xbf16, #tpu.memory_space<vmem>>, vector<1x4x128xbf16>
    %84 = vector.shape_cast %83 : vector<1x4x128xbf16> to vector<4x128xbf16>
    %cst_73 = arith.constant dense<0.000000e+00> : vector<128x128xf32>
    %85 = tpu.matmul %82, %84, %cst_73 {dimension_numbers = #tpu.dot_dimension_numbers<[1], [0], [0], [1], [0, 0, 1, 1], [], []>} : vector<128x4xbf16>, vector<4x128xbf16>, vector<128x128xf32> -> vector<128x128xf32>
    %86 = arith.addf %79, %85 : vector<128x128xf32>
    %c0_74 = arith.constant 0 : index
    %c0_75 = arith.constant 0 : index
    %87 = vector.load %arg5[%c0_74, %c0_75] : memref<1x128xf32, #tpu.memory_space<vmem>>, vector<1x128xf32>
    %88 = vector.broadcast %87 : vector<1x128xf32> to vector<128x128xf32>
    %89 = arith.addf %86, %88 : vector<128x128xf32>
    %cst_76 = arith.constant 0.000000e+00 : f32
    %90 = vector.broadcast %cst_76 : f32 to vector<128x128xf32>
    %91 = arith.maximumf %89, %90 : vector<128x128xf32>
    %92 = vector.shape_cast %91 : vector<128x128xf32> to vector<8x16x128xf32>
    %93 = arith.truncf %92 : vector<8x16x128xf32> to vector<8x16x128xbf16>
    %c0_77 = arith.constant 0 : index
    %c0_78 = arith.constant 0 : index
    %c0_79 = arith.constant 0 : index
    %c0_80 = arith.constant 0 : index
    %94 = vector.load %arg6[%c0_77, %c0_78, %c0_79, %c0_80] : memref<1x8x16x128xbf16, #tpu.memory_space<vmem>>, vector<1x8x16x128xbf16>
    %95 = vector.shape_cast %94 : vector<1x8x16x128xbf16> to vector<8x16x128xbf16>
    %96 = vector.shape_cast %93 : vector<8x16x128xbf16> to vector<1x8x16x128xbf16>
    tpu.vector_store %arg6[%c0_77, %c0_78, %c0_79, %c0_80], %96 {strides = array<i32>} : memref<1x8x16x128xbf16, #tpu.memory_space<vmem>>, vector<1x8x16x128xbf16>,
    return
  }
  func.func @transform_0(%arg0: i32, %arg1: i32) -> (i32, i32, i32, i32) {
    %c0_i32 = arith.constant 0 : i32
    %c0_i32_0 = arith.constant 0 : i32
    %c0_i32_1 = arith.constant 0 : i32
    %c0_i32_2 = arith.constant 0 : i32
    return %arg0, %c0_i32, %c0_i32_0, %c0_i32_1 : i32, i32, i32, i32
  }
  func.func @transform_1(%arg0: i32, %arg1: i32) -> (i32, i32, i32, i32) {
    %c0_i32 = arith.constant 0 : i32
    %c0_i32_0 = arith.constant 0 : i32
    %c0_i32_1 = arith.constant 0 : i32
    %c0_i32_2 = arith.constant 0 : i32
    return %arg0, %c0_i32, %c0_i32_0, %c0_i32_1 : i32, i32, i32, i32
  }
  func.func @transform_2(%arg0: i32, %arg1: i32) -> (i32, i32, i32) {
    %c0_i32 = arith.constant 0 : i32
    %c0_i32_0 = arith.constant 0 : i32
    %c0_i32_1 = arith.constant 0 : i32
    %c0_i32_2 = arith.constant 0 : i32
    return %c0_i32, %c0_i32_0, %c0_i32_1 : i32, i32, i32
  }
  func.func @transform_3(%arg0: i32, %arg1: i32) -> (i32, i32) {
    %c0_i32 = arith.constant 0 : i32
    %c0_i32_0 = arith.constant 0 : i32
    %c0_i32_1 = arith.constant 0 : i32
    return %c0_i32, %c0_i32_0 : i32, i32
  }
  func.func @transform_4(%arg0: i32, %arg1: i32) -> (i32, i32, i32, i32) {
    %c0_i32 = arith.constant 0 : i32
    %c0_i32_0 = arith.constant 0 : i32
    %c0_i32_1 = arith.constant 0 : i32
    return %arg0, %arg1, %c0_i32, %c0_i32_0 : i32, i32, i32, i32
  }
}

</mosaic_0001>

<llo_original>
// kernel: tpu_custom_call.1
$region0: #{tpu_custom_call.1}
  #allocation0 [shape = 'u32[]', space=smem, size = 0x4, offset = 0x4, fixed_abs, tag = 'smem constant byte address 0x4 - core index']
  #allocation1 [shape = 'u32[144,128]{1,0:T(1,128)}', space=vmem, size = 0x12000, scoped, tag = 'internal scratch']
  #allocation2 [shape = 'f32[10,18,4]{2,1,0:T(8,128)}', space=vmem, size = 0x1e000, scoped, tag = 'scratch operand']
  %s0 = inlined_call_operand.vmem [shape: f32[2,16,16,4], index: 0, kind: input, shape index: {}]
  %s1 = inlined_call_operand.vmem [shape: f32[2,16,16,4], index: 1, kind: input, shape index: {}]
  %s2 = inlined_call_operand.vmem [shape: bf16[9,4,128], index: 2, kind: input, shape index: {}]
  %s3 = inlined_call_operand.vmem [shape: f32[1,128], index: 3, kind: input, shape index: {}]
  %s4 = inlined_call_operand.hbm [shape: bf16[2,16,16,128], index: 4, kind: output, shape index: {}]
  %s5 = sld [smem:[#allocation0]]
  $region65: #{tpu_custom_call.1} parent=0
    _
  %s7 = ssub.s32 1, %s5
  %s8 = scalar_select 0, %s7, %s5
  $region1: #{tpu_custom_call.1} parent=0
    #allocation3 [shape = 'u8[65536]{0}', space=vmem, size = 0x10000, scoped, tag = 'output window, operand 0']
    #allocation4 [shape = 's32[2]{0}', space=sflag, size = 0x8, scoped, tag = 'scoped memory for tpu_custom_call.1']
    %9 = vsyncpa [#allocation4], 0
    %s10 = scalar_lea.sflag [#allocation4], 1
    %11 = vsyncpa %s10, 0
    loop: start=0, step=1, limit=6
    $region2: #{tpu_custom_call.1} parent=1 // loop_pre_header
      _
    $region3: #{tpu_custom_call.1} parent=1 // loop_header
      %s13 = sphi 0, %s17
      %p14 = scmp.ge.s32.totalorder %s13, 6
      %s20 = sphi 0, %s32
      %s21 = sphi 0, %s28
      %s22 = sphi 0, %s20
      %s23 = sphi 0, %s21
      %s24 = sphi 0, %s22
      %s25 = sphi 0, %s23
      %s35 = sphi 0, %s37
      %s38 = sphi 0, %s35
      %s39 = sphi 0, %s38
      %s55 = sphi 0, %s39
      %s61 = sphi 0, %s63
      %s64 = sphi 0, %s61
      %s65 = sphi 0, %s64
      %s81 = sphi 0, %s65
      %s85 = sphi 0, %s85
      %s87 = sphi 0, %s85
      %s88 = sphi 0, %s87
      %s102 = sphi 0, %s88
      %s106 = sphi 0, %s106
      %s108 = sphi 0, %s106
      %s109 = sphi 0, %s108
      %s123 = sphi 0, %s109
      %s131 = sphi 0, %s133
      %s134 = sphi 0, %s131
      %s135 = sphi 0, %s134
      %s151 = sphi 0, %s135
    $region4: #{tpu_custom_call.1} parent=1 // loop_header_branch
      %16 = sbr.rel (%p14) target = $region8
    $region5: #{tpu_custom_call.1} parent=1 // loop_body
      %s18 = ssub.s32 %s13, 1
      %s19 = ssub.s32 %s13, 2
      %s26 = sadd.s32 1, %s21
      %p27 = scmp.ge.s32.totalorder %s26, 2
      %s28 = scalar_select %p27, 0, %s26
      %s29 = sadd.s32 1, %s20
      %s30 = scalar_select %p27, %s29, %s20
      %p31 = scmp.ge.s32.totalorder %s30, 2
      %s32 = scalar_select %p31, 0, %s30
      %s33 = ssub.s32 %s20, %s32
      %p34 = scmp.eq.s32.totalorder %s33, 0
      %s36 = sadd.s32 %s35, 1
      %s37 = scalar_select %p34, %s35, %s36
      %p40 = pneg %p34
      %p41 = scmp.eq.s32.totalorder %s13, 3
      %p42 = por %p40, %p41
      %p43 = scmp.ne.s32.totalorder %s35, %s38
      %p44 = scmp.eq.s32.totalorder %s13, 0
      %p45 = por %p43, %p44
      %p46 = scmp.ne.s32.totalorder %s35, %s38
      %p47 = scmp.eq.s32.totalorder %s18, 3
      %p48 = por %p46, %p47
      %p49 = scmp.ne.s32.totalorder %s38, %s39
      %p50 = scmp.eq.s32.totalorder %s18, 0
      %p51 = por %p49, %p50
      %p52 = scmp.ne.s32.totalorder %s38, %s39
      %p53 = scmp.eq.s32.totalorder %s19, 3
      %p54 = por %p52, %p53
      %p56 = scmp.ne.s32.totalorder %s39, %s55
      %p57 = scmp.eq.s32.totalorder %s19, 0
      %p58 = por %p56, %p57
      %s59 = ssub.s32 %s20, %s32
      %p60 = scmp.eq.s32.totalorder %s59, 0
      %s62 = sadd.s32 %s61, 1
      %s63 = scalar_select %p60, %s61, %s62
      %p66 = pneg %p60
      %p67 = scmp.eq.s32.totalorder %s13, 3
      %p68 = por %p66, %p67
      %p69 = scmp.ne.s32.totalorder %s61, %s64
      %p70 = scmp.eq.s32.totalorder %s13, 0
      %p71 = por %p69, %p70
      %p72 = scmp.ne.s32.totalorder %s61, %s64
      %p73 = scmp.eq.s32.totalorder %s18, 3
      %p74 = por %p72, %p73
      %p75 = scmp.ne.s32.totalorder %s64, %s65
      %p76 = scmp.eq.s32.totalorder %s18, 0
      %p77 = por %p75, %p76
      %p78 = scmp.ne.s32.totalorder %s64, %s65
      %p79 = scmp.eq.s32.totalorder %s19, 3
      %p80 = por %p78, %p79
      %p82 = scmp.ne.s32.totalorder %s65, %s81
      %p83 = scmp.eq.s32.totalorder %s19, 0
      %p84 = por %p82, %p83
      %s86 = sadd.s32 %s85, 1
      %p89 = scmp.eq.s32.totalorder %s13, 3
      %p90 = scmp.ne.s32.totalorder %s85, %s87
      %p91 = scmp.eq.s32.totalorder %s13, 0
      %p92 = por %p90, %p91
      %p93 = scmp.ne.s32.totalorder %s85, %s87
      %p94 = scmp.eq.s32.totalorder %s18, 3
      %p95 = por %p93, %p94
      %p96 = scmp.ne.s32.totalorder %s87, %s88
      %p97 = scmp.eq.s32.totalorder %s18, 0
      %p98 = por %p96, %p97
      %p99 = scmp.ne.s32.totalorder %s87, %s88
      %p100 = scmp.eq.s32.totalorder %s19, 3
      %p101 = por %p99, %p100
      %p103 = scmp.ne.s32.totalorder %s88, %s102
      %p104 = scmp.eq.s32.totalorder %s19, 0
      %p105 = por %p103, %p104
      %s107 = sadd.s32 %s106, 1
      %p110 = scmp.eq.s32.totalorder %s13, 3
      %p111 = scmp.ne.s32.totalorder %s106, %s108
      %p112 = scmp.eq.s32.totalorder %s13, 0
      %p113 = por %p111, %p112
      %p114 = scmp.ne.s32.totalorder %s106, %s108
      %p115 = scmp.eq.s32.totalorder %s18, 3
      %p116 = por %p114, %p115
      %p117 = scmp.ne.s32.totalorder %s108, %s109
      %p118 = scmp.eq.s32.totalorder %s18, 0
      %p119 = por %p117, %p118
      %p120 = scmp.ne.s32.totalorder %s108, %s109
      %p121 = scmp.eq.s32.totalorder %s19, 3
      %p122 = por %p120, %p121
      %p124 = scmp.ne.s32.totalorder %s109, %s123
      %p125 = scmp.eq.s32.totalorder %s19, 0
      %p126 = por %p124, %p125
      %s127 = ssub.s32 %s20, %s32
      %s128 = ssub.s32 %s21, %s28
      %s129 = sor.u32 %s127, %s128
      %p130 = scmp.eq.s32.totalorder %s129, 0
      %s132 = sadd.s32 %s131, 1
      %s133 = scalar_select %p130, %s131, %s132
      %p136 = pneg %p130
      %p137 = scmp.eq.s32.totalorder %s13, 3
      %p138 = por %p136, %p137
      %p139 = scmp.ne.s32.totalorder %s131, %s134
      %p140 = scmp.eq.s32.totalorder %s13, 0
      %p141 = por %p139, %p140
      %p142 = scmp.ne.s32.totalorder %s131, %s134
      %p143 = scmp.eq.s32.totalorder %s18, 3
      %p144 = por %p142, %p143
      %p145 = scmp.ne.s32.totalorder %s134, %s135
      %p146 = scmp.eq.s32.totalorder %s18, 0
      %p147 = por %p145, %p146
      %p148 = scmp.ne.s32.totalorder %s134, %s135
      %p149 = scmp.eq.s32.totalorder %s19, 3
      %p150 = por %p148, %p149
      %p152 = scmp.ne.s32.totalorder %s135, %s151
      %p153 = scmp.eq.s32.totalorder %s19, 0
      %p154 = por %p152, %p153
      %p155 = scmp.le.s32.totalorder 1, %s13
      %p156 = scmp.lt.s32.totalorder %s13, 5
      %p157 = pnand %p155, %p156
      %p158 = pneg %p157
      // Predicated region
      $region9: #{tpu_custom_call.1} parent=5 // pred_check
        _
      $region10: #{tpu_custom_call.1} parent=5 // pred_check_branch
        %160 = sbr.rel (%p157) target = $region12
      $region11: #{tpu_custom_call.1} parent=5 // pred_region
        %s161 = ssub.s32 %s13, 1
        // Predicated region
        $region13: #{tpu_custom_call.1} parent=11 // pred_check
          %p162 = pneg %p98
        $region14: #{tpu_custom_call.1} parent=11 // pred_check_branch
          %164 = sbr.rel (%p162) target = $region16
        $region15: #{tpu_custom_call.1} parent=11 // pred_region
          _
        $region16: #{tpu_custom_call.1} parent=11 // pred_fallthru
          _
        // Predicated region
        $region17: #{tpu_custom_call.1} parent=11 // pred_check
          %p165 = pneg %p119
        $region18: #{tpu_custom_call.1} parent=11 // pred_check_branch
          %167 = sbr.rel (%p165) target = $region20
        $region19: #{tpu_custom_call.1} parent=11 // pred_region
          _
        $region20: #{tpu_custom_call.1} parent=11 // pred_fallthru
          _
      $region12: #{tpu_custom_call.1} parent=5 // pred_fallthru
        _
      %p168 = scmp.lt.s32.totalorder %s13, 4
      // Predicated region
      $region21: #{tpu_custom_call.1} parent=5 // pred_check
        %p169 = pneg %p168
      $region22: #{tpu_custom_call.1} parent=5 // pred_check_branch
        %171 = sbr.rel (%p169) target = $region24
      $region23: #{tpu_custom_call.1} parent=5 // pred_region
        // Predicated region
        $region25: #{tpu_custom_call.1} parent=23 // pred_check
          %p172 = pneg %p45
        $region26: #{tpu_custom_call.1} parent=23 // pred_check_branch
          %174 = sbr.rel (%p172) target = $region28
        $region27: #{tpu_custom_call.1} parent=23 // pred_region
          %p175 = scmp.lt.s32.totalorder %s20, 1
          %s176 = scalar_select %p175, %s20, 1
          %s177 = smul.addr %s176, 32
          %s178 = smul.addr %s177, 8
          %s179 = scalar_lea.vmem %s0, %s178
        $region28: #{tpu_custom_call.1} parent=23 // pred_fallthru
          _
        // Predicated region
        $region29: #{tpu_custom_call.1} parent=23 // pred_check
          %p180 = pneg %p71
        $region30: #{tpu_custom_call.1} parent=23 // pred_check_branch
          %182 = sbr.rel (%p180) target = $region32
        $region31: #{tpu_custom_call.1} parent=23 // pred_region
          %p183 = scmp.lt.s32.totalorder %s20, 1
          %s184 = scalar_select %p183, %s20, 1
          %s185 = smul.addr %s184, 32
          %s186 = smul.addr %s185, 8
          %s187 = scalar_lea.vmem %s1, %s186
        $region32: #{tpu_custom_call.1} parent=23 // pred_fallthru
          _
      $region24: #{tpu_custom_call.1} parent=5 // pred_fallthru
        _
      %p188 = scmp.le.s32.totalorder 1, %s13
      %p189 = scmp.lt.s32.totalorder %s13, 5
      %p190 = pnand %p188, %p189
      %p191 = pneg %p190
      // Predicated region
      $region33: #{tpu_custom_call.1} parent=5 // pred_check
        _
      $region34: #{tpu_custom_call.1} parent=5 // pred_check_branch
        %193 = sbr.rel (%p190) target = $region36
      $region35: #{tpu_custom_call.1} parent=5 // pred_region
        %s194 = ssub.s32 %s13, 1
        %p195 = scmp.lt.s32.totalorder %s22, 1
        %s196 = scalar_select %p195, %s22, 1
        %s197 = smul.addr %s196, 32
        %s198 = smul.addr %s197, 8
        %s199 = scalar_lea.vmem %s0, %s198
        %p200 = pneg %p51
        %p201 = pneg %p48
        %p202 = scmp.lt.s32.totalorder %s22, 1
        %s203 = scalar_select %p202, %s22, 1
        %s204 = smul.addr %s203, 32
        %s205 = smul.addr %s204, 8
        %s206 = scalar_lea.vmem %s1, %s205
        %p207 = pneg %p77
        %p208 = pneg %p74
        %p209 = pneg %p98
        %p210 = pneg %p95
        %p211 = pneg %p119
        %p212 = pneg %p116
        %p213 = pneg %p147
        %p214 = pneg %p144
        %s215 = sand.u32 %s134, 1
        %s216 = scalar_lea.sflag [#allocation4], %s215
        %s217 = sand.u32 %s134, 1
        %s218 = smul.addr %s217, 64
        %s219 = scalar_lea.vmem [#allocation3], %s218
        %p220 = scmp.lt.s32.totalorder %s22, 1
        %s221 = scalar_select %p220, %s22, 1
        %s222 = smul.addr %s221, 32
        %s223 = smul.addr %s222, 8
        %s224 = scalar_lea.vmem %s0, %s223
        %p225 = scmp.lt.s32.totalorder %s22, 1
        %s226 = scalar_select %p225, %s22, 1
        %s227 = smul.addr %s226, 32
        %s228 = smul.addr %s227, 8
        %s229 = scalar_lea.vmem %s1, %s228
        %s230 = smul.u32 8, %s23
        %s232 = smul.u32 %s23, 8
        %vm233 = vcmask 24576
        %234 = vst.msk [vmem:[#allocation2] sm:$0x1] %vm233, 0.0
        %235 = vst.msk [vmem:[#allocation2 + $0x18] sm:$0x1] %vm233, 0.0
        %236 = vst.msk [vmem:[#allocation2 + $0x30] sm:$0x1] %vm233, 0.0
        %237 = vst.msk [vmem:[#allocation2 + $0x48] sm:$0x1] %vm233, 0.0
        %238 = vst.msk [vmem:[#allocation2 + $0x60] sm:$0x1] %vm233, 0.0
        %239 = vst.msk [vmem:[#allocation2 + $0x78] sm:$0x1] %vm233, 0.0
        %240 = vst.msk [vmem:[#allocation2 + $0x90] sm:$0x1] %vm233, 0.0
        %241 = vst.msk [vmem:[#allocation2 + $0xa8] sm:$0x1] %vm233, 0.0
        %242 = vst.msk [vmem:[#allocation2 + $0xc0] sm:$0x1] %vm233, 0.0
        %243 = vst.msk [vmem:[#allocation2 + $0xd8] sm:$0x1] %vm233, 0.0
        %244 = vst.msk [vmem:[#allocation2 + $0x11] sm:$0x1] %vm233, 0.0
        %245 = vst.msk [vmem:[#allocation2 + $0x29] sm:$0x1] %vm233, 0.0
        %246 = vst.msk [vmem:[#allocation2 + $0x41] sm:$0x1] %vm233, 0.0
        %247 = vst.msk [vmem:[#allocation2 + $0x59] sm:$0x1] %vm233, 0.0
        %248 = vst.msk [vmem:[#allocation2 + $0x71] sm:$0x1] %vm233, 0.0
        %249 = vst.msk [vmem:[#allocation2 + $0x89] sm:$0x1] %vm233, 0.0
        %250 = vst.msk [vmem:[#allocation2 + $0xa1] sm:$0x1] %vm233, 0.0
        %251 = vst.msk [vmem:[#allocation2 + $0xb9] sm:$0x1] %vm233, 0.0
        %252 = vst.msk [vmem:[#allocation2 + $0xd1] sm:$0x1] %vm233, 0.0
        %253 = vst.msk [vmem:[#allocation2 + $0xe9] sm:$0x1] %vm233, 0.0
        %s254 = smul.u32 %s232, 16
        %s255 = scalar_lea.vmem %s224, %s254
        %v256 = vld [vmem:[%s255] sm:$0xff]
        %v257 = vld [vmem:[%s255 + $0x8] sm:$0xff]
        %v258 = vld [vmem:[%s255 + $0x10] sm:$0xff]
        %v259 = vld [vmem:[%s255 + $0x18] sm:$0xff]
        %v260 = vld [vmem:[%s255 + $0x20] sm:$0xff]
        %v261 = vld [vmem:[%s255 + $0x28] sm:$0xff]
        %v262 = vld [vmem:[%s255 + $0x30] sm:$0xff]
        %v263 = vld [vmem:[%s255 + $0x38] sm:$0xff]
        %v264 = vld [vmem:[%s255 + $0x40] sm:$0xff]
        %v265 = vld [vmem:[%s255 + $0x48] sm:$0xff]
        %v266 = vld [vmem:[%s255 + $0x50] sm:$0xff]
        %v267 = vld [vmem:[%s255 + $0x58] sm:$0xff]
        %v268 = vld [vmem:[%s255 + $0x60] sm:$0xff]
        %v269 = vld [vmem:[%s255 + $0x68] sm:$0xff]
        %v270 = vld [vmem:[%s255 + $0x70] sm:$0xff]
        %v271 = vld [vmem:[%s255 + $0x78] sm:$0xff]
        %s272 = scalar_lea.vmem %s229, %s254
        %v273 = vld [vmem:[%s272] sm:$0xff]
        %v274 = vld [vmem:[%s272 + $0x8] sm:$0xff]
        %v275 = vld [vmem:[%s272 + $0x10] sm:$0xff]
        %v276 = vld [vmem:[%s272 + $0x18] sm:$0xff]
        %v277 = vld [vmem:[%s272 + $0x20] sm:$0xff]
        %v278 = vld [vmem:[%s272 + $0x28] sm:$0xff]
        %v279 = vld [vmem:[%s272 + $0x30] sm:$0xff]
        %v280 = vld [vmem:[%s272 + $0x38] sm:$0xff]
        %v281 = vld [vmem:[%s272 + $0x40] sm:$0xff]
        %v282 = vld [vmem:[%s272 + $0x48] sm:$0xff]
        %v283 = vld [vmem:[%s272 + $0x50] sm:$0xff]
        %v284 = vld [vmem:[%s272 + $0x58] sm:$0xff]
        %v285 = vld [vmem:[%s272 + $0x60] sm:$0xff]
        %v286 = vld [vmem:[%s272 + $0x68] sm:$0xff]
        %v287 = vld [vmem:[%s272 + $0x70] sm:$0xff]
        %v288 = vld [vmem:[%s272 + $0x78] sm:$0xff]
        %v289 = vmul.f32 %v256, %v273
        %v290 = vmul.f32 %v257, %v274
        %v291 = vmul.f32 %v258, %v275
        %v292 = vmul.f32 %v259, %v276
        %v293 = vmul.f32 %v260, %v277
        %v294 = vmul.f32 %v261, %v278
        %v295 = vmul.f32 %v262, %v279
        %v296 = vmul.f32 %v263, %v280
        %v297 = vmul.f32 %v264, %v281
        %v298 = vmul.f32 %v265, %v282
        %v299 = vmul.f32 %v266, %v283
        %v300 = vmul.f32 %v267, %v284
        %v301 = vmul.f32 %v268, %v285
        %v302 = vmul.f32 %v269, %v286
        %v303 = vmul.f32 %v270, %v287
        %v304 = vmul.f32 %v271, %v288
        %s305 = scalar_lea.vmem [#allocation2], 24
        %vm306 = vcmask 31744
        %307 = vst.msk [vmem:[%s305 + $0x1] sm:$0xff] %vm306, %v289
        %308 = vst.msk [vmem:[%s305 + $0x9] sm:$0xff] %vm306, %v290
        %309 = vst.msk [vmem:[%s305 + $0x19] sm:$0xff] %vm306, %v291
        %310 = vst.msk [vmem:[%s305 + $0x21] sm:$0xff] %vm306, %v292
        %311 = vst.msk [vmem:[%s305 + $0x31] sm:$0xff] %vm306, %v293
        %312 = vst.msk [vmem:[%s305 + $0x39] sm:$0xff] %vm306, %v294
        %313 = vst.msk [vmem:[%s305 + $0x49] sm:$0xff] %vm306, %v295
        %314 = vst.msk [vmem:[%s305 + $0x51] sm:$0xff] %vm306, %v296
        %315 = vst.msk [vmem:[%s305 + $0x61] sm:$0xff] %vm306, %v297
        %316 = vst.msk [vmem:[%s305 + $0x69] sm:$0xff] %vm306, %v298
        %317 = vst.msk [vmem:[%s305 + $0x79] sm:$0xff] %vm306, %v299
        %318 = vst.msk [vmem:[%s305 + $0x81] sm:$0xff] %vm306, %v300
        %319 = vst.msk [vmem:[%s305 + $0x91] sm:$0xff] %vm306, %v301
        %320 = vst.msk [vmem:[%s305 + $0x99] sm:$0xff] %vm306, %v302
        %321 = vst.msk [vmem:[%s305 + $0xa9] sm:$0xff] %vm306, %v303
        %322 = vst.msk [vmem:[%s305 + $0xb1] sm:$0xff] %vm306, %v304
        %p323 = scmp.eq.s32.totalorder %s23, 0
        // Predicated region
        $region37: #{tpu_custom_call.1} parent=35 // pred_check
          %p324 = pneg %p323
        $region38: #{tpu_custom_call.1} parent=35 // pred_check_branch
          %326 = sbr.rel (%p324) target = $region40
        $region39: #{tpu_custom_call.1} parent=35 // pred_region
          %327 = vst.msk [vmem:[#allocation2 + $0x1] sm:$0xff] %vm306, 0.0
          %328 = vst.msk [vmem:[#allocation2 + $0x9] sm:$0xff] %vm306, 0.0
        $region40: #{tpu_custom_call.1} parent=35 // pred_fallthru
          _
        %p329 = scmp.gt.s32.totalorder %s23, 0
        // Predicated region
        $region41: #{tpu_custom_call.1} parent=35 // pred_check
          %p330 = pneg %p329
        $region42: #{tpu_custom_call.1} parent=35 // pred_check_branch
          %332 = sbr.rel (%p330) target = $region44
        $region43: #{tpu_custom_call.1} parent=35 // pred_region
          %s333 = ssub.s32 %s232, 1
          %s334 = smul.u32 %s333, 16
          %s335 = scalar_lea.vmem %s224, %s334
          %v336 = vld [vmem:[%s335] sm:$0xff]
          %v337 = vld [vmem:[%s335 + $0x8] sm:$0xff]
          %s338 = scalar_lea.vmem %s229, %s334
          %v339 = vld [vmem:[%s338] sm:$0xff]
          %v340 = vld [vmem:[%s338 + $0x8] sm:$0xff]
          %v341 = vmul.f32 %v336, %v339
          %v342 = vmul.f32 %v337, %v340
          %343 = vst.msk [vmem:[#allocation2 + $0x1] sm:$0xff] %vm306, %v341
          %344 = vst.msk [vmem:[#allocation2 + $0x9] sm:$0xff] %vm306, %v342
        $region44: #{tpu_custom_call.1} parent=35 // pred_fallthru
          _
        %p345 = scmp.eq.s32.totalorder %s23, 1
        // Predicated region
        $region45: #{tpu_custom_call.1} parent=35 // pred_check
          %p346 = pneg %p345
        $region46: #{tpu_custom_call.1} parent=35 // pred_check_branch
          %348 = sbr.rel (%p346) target = $region48
        $region47: #{tpu_custom_call.1} parent=35 // pred_region
          %s349 = scalar_lea.vmem [#allocation2], 216
          %350 = vst.msk [vmem:[%s349 + $0x1] sm:$0xff] %vm306, 0.0
          %351 = vst.msk [vmem:[%s349 + $0x9] sm:$0xff] %vm306, 0.0
        $region48: #{tpu_custom_call.1} parent=35 // pred_fallthru
          _
        %p352 = scmp.lt.s32.totalorder %s23, 1
        // Predicated region
        $region49: #{tpu_custom_call.1} parent=35 // pred_check
          %p353 = pneg %p352
        $region50: #{tpu_custom_call.1} parent=35 // pred_check_branch
          %355 = sbr.rel (%p353) target = $region52
        $region51: #{tpu_custom_call.1} parent=35 // pred_region
          %s356 = sadd.s32 %s232, 8
          %s357 = smul.u32 %s356, 16
          %s358 = scalar_lea.vmem %s224, %s357
          %v359 = vld [vmem:[%s358] sm:$0xff]
          %v360 = vld [vmem:[%s358 + $0x8] sm:$0xff]
          %s361 = scalar_lea.vmem %s229, %s357
          %v362 = vld [vmem:[%s361] sm:$0xff]
          %v363 = vld [vmem:[%s361 + $0x8] sm:$0xff]
          %v364 = vmul.f32 %v359, %v362
          %v365 = vmul.f32 %v360, %v363
          %s366 = scalar_lea.vmem [#allocation2], 216
          %367 = vst.msk [vmem:[%s366 + $0x1] sm:$0xff] %vm306, %v364
          %368 = vst.msk [vmem:[%s366 + $0x9] sm:$0xff] %vm306, %v365
        $region52: #{tpu_custom_call.1} parent=35 // pred_fallthru
          _
        %v369 = vld [vmem:[#allocation2] sm:$0xff]
        %v370 = vld [vmem:[#allocation2 + $0x8] sm:$0xff]
        %v371 = vld [vmem:[#allocation2 + $0x18] sm:$0xff]
        %v372 = vld [vmem:[#allocation2 + $0x20] sm:$0xff]
        %v373 = vld [vmem:[#allocation2 + $0x30] sm:$0xff]
        %v374 = vld [vmem:[#allocation2 + $0x38] sm:$0xff]
        %v375 = vld [vmem:[#allocation2 + $0x48] sm:$0xff]
        %v376 = vld [vmem:[#allocation2 + $0x50] sm:$0xff]
        %v377 = vld [vmem:[#allocation2 + $0x60] sm:$0xff]
        %v378 = vld [vmem:[#allocation2 + $0x68] sm:$0xff]
        %v379 = vld [vmem:[#allocation2 + $0x78] sm:$0xff]
        %v380 = vld [vmem:[#allocation2 + $0x80] sm:$0xff]
        %v381 = vld [vmem:[#allocation2 + $0x90] sm:$0xff]
        %v382 = vld [vmem:[#allocation2 + $0x98] sm:$0xff]
        %v383 = vld [vmem:[#allocation2 + $0xa8] sm:$0xff]
        %v384 = vld [vmem:[#allocation2 + $0xb0] sm:$0xff]
        %v385 = vpack.c.bf16 %v370, %v369
        %v386 = vpack.c.bf16 %v372, %v371
        %v387 = vpack.c.bf16 %v374, %v373
        %v388 = vpack.c.bf16 %v376, %v375
        %v389 = vpack.c.bf16 %v378, %v377
        %v390 = vpack.c.bf16 %v380, %v379
        %v391 = vpack.c.bf16 %v382, %v381
        %v392 = vpack.c.bf16 %v384, %v383
        %v393 = vld [vmem:[%s2] sm:$0x3]
        %v394 = vld [vmem:[#allocation2 + $0x1] sm:$0xff]
        %v395 = vld [vmem:[#allocation2 + $0x9] sm:$0xff]
        %v396 = vld [vmem:[#allocation2 + $0x19] sm:$0xff]
        %v397 = vld [vmem:[#allocation2 + $0x21] sm:$0xff]
        %v398 = vld [vmem:[#allocation2 + $0x31] sm:$0xff]
        %v399 = vld [vmem:[#allocation2 + $0x39] sm:$0xff]
        %v400 = vld [vmem:[#allocation2 + $0x49] sm:$0xff]
        %v401 = vld [vmem:[#allocation2 + $0x51] sm:$0xff]
        %v402 = vld [vmem:[#allocation2 + $0x61] sm:$0xff]
        %v403 = vld [vmem:[#allocation2 + $0x69] sm:$0xff]
        %v404 = vld [vmem:[#allocation2 + $0x79] sm:$0xff]
        %v405 = vld [vmem:[#allocation2 + $0x81] sm:$0xff]
        %v406 = vld [vmem:[#allocation2 + $0x91] sm:$0xff]
        %v407 = vld [vmem:[#allocation2 + $0x99] sm:$0xff]
        %v408 = vld [vmem:[#allocation2 + $0xa9] sm:$0xff]
        %v409 = vld [vmem:[#allocation2 + $0xb1] sm:$0xff]
        %v410 = vpack.c.bf16 %v395, %v394
        %v411 = vpack.c.bf16 %v397, %v396
        %v412 = vpack.c.bf16 %v399, %v398
        %v413 = vpack.c.bf16 %v401, %v400
        %v414 = vpack.c.bf16 %v403, %v402
        %v415 = vpack.c.bf16 %v405, %v404
        %v416 = vpack.c.bf16 %v407, %v406
        %v417 = vpack.c.bf16 %v409, %v408
        %s418 = scalar_lea.vmem %s2, 2
        %v419 = vld [vmem:[%s418] sm:$0x3]
        %v421 = vsel %vm306, %v410, 0
        %v424 = vsel %vm306, %v411, 0
        %v427 = vsel %vm306, %v412, 0
        %v430 = vsel %vm306, %v413, 0
        %v433 = vsel %vm306, %v414, 0
        %v436 = vsel %vm306, %v415, 0
        %v439 = vsel %vm306, %v416, 0
        %v442 = vsel %vm306, %v417, 0
        %vm444 = vcmask 1041408
        %v446 = vsel %vm444, %v419, 0
        %448 = vmatprep.subr.bf16.mxu0 0
        %449 = vmatpush1.bf16.msra.mxu0 %v446
        %450 = vmatprep.subr.bf16.mxu0 0
        %451 = vmatpush1.bf16.msra.mxu0 0
        %452 = vmatprep.subr.bf16.mxu0 0
        %453 = vmatpush1.bf16.msra.mxu0 0
        %454 = vmatprep.subr.bf16.mxu0 0
        %455 = vmatpush1.bf16.msra.mxu0 0
        %456 = vmatprep.subr.bf16.mxu0 0
        %457 = vmatpush1.bf16.msra.mxu0 0
        %458 = vmatprep.subr.bf16.mxu0 0
        %459 = vmatpush1.bf16.msra.mxu0 0
        %460 = vmatprep.subr.bf16.mxu0 0
        %461 = vmatpush1.bf16.msra.mxu0 0
        %462 = vmatprep.subr.bf16.mxu0 0
        %463 = vmatpush1.bf16.msra.mxu0 0
        %464 = vmatprep.subr.bf16.mxu0 0
        %465 = vmatpush1.bf16.msra.mxu0 0
        %466 = vmatprep.subr.bf16.mxu0 0
        %467 = vmatpush1.bf16.msra.mxu0 0
        %468 = vmatprep.subr.bf16.mxu0 0
        %469 = vmatpush1.bf16.msra.mxu0 0
        %470 = vmatprep.subr.bf16.mxu0 0
        %471 = vmatpush1.bf16.msra.mxu0 0
        %472 = vmatprep.subr.bf16.mxu0 0
        %473 = vmatpush1.bf16.msra.mxu0 0
        %474 = vmatprep.subr.bf16.mxu0 0
        %475 = vmatpush1.bf16.msra.mxu0 0
        %476 = vmatprep.subr.bf16.mxu0 0
        %477 = vmatpush1.bf16.msra.mxu0 0
        %478 = vmatprep.subr.bf16.mxu0 0
        %479 = vmatpush1.bf16.msra.mxu0 0
        %480 = vmatprep.mubr.bf16.mxu0 0
        %481 = vmatmul.mubr.bf16.gmra.mrb[0].mxu0 %v421
        %v482 = vpop.f32.mrb[0].mxu0
        %v483 = vadd.f32 0.0, %v482
        %v484 = vpop.f32.mrb[0].mxu0
        %v485 = vpop.f32.mrb[0].mxu0
        %v486 = vadd.f32 0.0, %v485
        %v487 = vpop.f32.mrb[0].mxu0
        %488 = vmatprep.mubr.bf16.mxu0 0
        %489 = vmatmul.mubr.bf16.gmra.mrb[0].mxu0 %v424
        %v490 = vpop.f32.mrb[0].mxu0
        %v491 = vadd.f32 0.0, %v490
        %v492 = vpop.f32.mrb[0].mxu0
        %v493 = vpop.f32.mrb[0].mxu0
        %v494 = vadd.f32 0.0, %v493
        %v495 = vpop.f32.mrb[0].mxu0
        %496 = vmatprep.mubr.bf16.mxu0 0
        %497 = vmatmul.mubr.bf16.gmra.mrb[0].mxu0 %v427
        %v498 = vpop.f32.mrb[0].mxu0
        %v499 = vadd.f32 0.0, %v498
        %v500 = vpop.f32.mrb[0].mxu0
        %v501 = vpop.f32.mrb[0].mxu0
        %v502 = vadd.f32 0.0, %v501
        %v503 = vpop.f32.mrb[0].mxu0
        %504 = vmatprep.mubr.bf16.mxu0 0
        %505 = vmatmul.mubr.bf16.gmra.mrb[0].mxu0 %v430
        %v506 = vpop.f32.mrb[0].mxu0
        %v507 = vadd.f32 0.0, %v506
        %v508 = vpop.f32.mrb[0].mxu0
        %v509 = vpop.f32.mrb[0].mxu0
        %v510 = vadd.f32 0.0, %v509
        %v511 = vpop.f32.mrb[0].mxu0
        %512 = vmatprep.mubr.bf16.mxu0 0
        %513 = vmatmul.mubr.bf16.gmra.mrb[0].mxu0 %v433
        %v514 = vpop.f32.mrb[0].mxu0
        %v515 = vadd.f32 0.0, %v514
        %v516 = vpop.f32.mrb[0].mxu0
        %v517 = vpop.f32.mrb[0].mxu0
        %v518 = vadd.f32 0.0, %v517
        %v519 = vpop.f32.mrb[0].mxu0
        %520 = vmatprep.mubr.bf16.mxu0 0
        %521 = vmatmul.mubr.bf16.gmra.mrb[0].mxu0 %v436
        %v522 = vpop.f32.mrb[0].mxu0
        %v523 = vadd.f32 0.0, %v522
        %v524 = vpop.f32.mrb[0].mxu0
        %v525 = vpop.f32.mrb[0].mxu0
        %v526 = vadd.f32 0.0, %v525
        %v527 = vpop.f32.mrb[0].mxu0
        %528 = vmatprep.mubr.bf16.mxu0 0
        %529 = vmatmul.mubr.bf16.gmra.mrb[0].mxu0 %v439
        %v530 = vpop.f32.mrb[0].mxu0
        %v531 = vadd.f32 0.0, %v530
        %v532 = vpop.f32.mrb[0].mxu0
        %v533 = vpop.f32.mrb[0].mxu0
        %v534 = vadd.f32 0.0, %v533
        %v535 = vpop.f32.mrb[0].mxu0
        %536 = vmatprep.mubr.bf16.mxu0 0
        %537 = vmatmul.mubr.bf16.gmra.mrb[0].mxu0 %v442
        %v538 = vpop.f32.mrb[0].mxu0
        %v539 = vadd.f32 0.0, %v538
        %v540 = vpop.f32.mrb[0].mxu0
        %v541 = vpop.f32.mrb[0].mxu0
        %v542 = vadd.f32 0.0, %v541
        %v543 = vpop.f32.mrb[0].mxu0
        %544 = vdwg.mxu0
        %v546 = vsel %vm306, %v385, 0
        %v549 = vsel %vm306, %v386, 0
        %v552 = vsel %vm306, %v387, 0
        %v555 = vsel %vm306, %v388, 0
        %v558 = vsel %vm306, %v389, 0
        %v561 = vsel %vm306, %v390, 0
        %v564 = vsel %vm306, %v391, 0
        %v567 = vsel %vm306, %v392, 0
        %v570 = vsel %vm444, %v393, 0
        %572 = vmatprep.subr.bf16.mxu0 0
        %573 = vmatpush1.bf16.msra.mxu0 %v570
        %574 = vmatprep.subr.bf16.mxu0 0
        %575 = vmatpush1.bf16.msra.mxu0 0
        %576 = vmatprep.subr.bf16.mxu0 0
        %577 = vmatpush1.bf16.msra.mxu0 0
        %578 = vmatprep.subr.bf16.mxu0 0
        %579 = vmatpush1.bf16.msra.mxu0 0
        %580 = vmatprep.subr.bf16.mxu0 0
        %581 = vmatpush1.bf16.msra.mxu0 0
        %582 = vmatprep.subr.bf16.mxu0 0
        %583 = vmatpush1.bf16.msra.mxu0 0
        %584 = vmatprep.subr.bf16.mxu0 0
        %585 = vmatpush1.bf16.msra.mxu0 0
        %586 = vmatprep.subr.bf16.mxu0 0
        %587 = vmatpush1.bf16.msra.mxu0 0
        %588 = vmatprep.subr.bf16.mxu0 0
        %589 = vmatpush1.bf16.msra.mxu0 0
        %590 = vmatprep.subr.bf16.mxu0 0
        %591 = vmatpush1.bf16.msra.mxu0 0
        %592 = vmatprep.subr.bf16.mxu0 0
        %593 = vmatpush1.bf16.msra.mxu0 0
        %594 = vmatprep.subr.bf16.mxu0 0
        %595 = vmatpush1.bf16.msra.mxu0 0
        %596 = vmatprep.subr.bf16.mxu0 0
        %597 = vmatpush1.bf16.msra.mxu0 0
        %598 = vmatprep.subr.bf16.mxu0 0
        %599 = vmatpush1.bf16.msra.mxu0 0
        %600 = vmatprep.subr.bf16.mxu0 0
        %601 = vmatpush1.bf16.msra.mxu0 0
        %602 = vmatprep.subr.bf16.mxu0 0
        %603 = vmatpush1.bf16.msra.mxu0 0
        %604 = vmatprep.mubr.bf16.mxu0 0
        %605 = vmatmul.mubr.bf16.gmra.mrb[0].mxu0 %v546
        %v606 = vpop.f32.mrb[0].mxu0
        %v607 = vadd.f32 %v483, %v606
        %v608 = vpop.f32.mrb[0].mxu0
        %v609 = vpop.f32.mrb[0].mxu0
        %v610 = vadd.f32 %v486, %v609
        %v611 = vpop.f32.mrb[0].mxu0
        %612 = vmatprep.mubr.bf16.mxu0 0
        %613 = vmatmul.mubr.bf16.gmra.mrb[0].mxu0 %v549
        %v614 = vpop.f32.mrb[0].mxu0
        %v615 = vadd.f32 %v491, %v614
        %v616 = vpop.f32.mrb[0].mxu0
        %v617 = vpop.f32.mrb[0].mxu0
        %v618 = vadd.f32 %v494, %v617
        %v619 = vpop.f32.mrb[0].mxu0
        %620 = vmatprep.mubr.bf16.mxu0 0
        %621 = vmatmul.mubr.bf16.gmra.mrb[0].mxu0 %v552
        %v622 = vpop.f32.mrb[0].mxu0
        %v623 = vadd.f32 %v499, %v622
        %v624 = vpop.f32.mrb[0].mxu0
        %v625 = vpop.f32.mrb[0].mxu0
        %v626 = vadd.f32 %v502, %v625
        %v627 = vpop.f32.mrb[0].mxu0
        %628 = vmatprep.mubr.bf16.mxu0 0
        %629 = vmatmul.mubr.bf16.gmra.mrb[0].mxu0 %v555
        %v630 = vpop.f32.mrb[0].mxu0
        %v631 = vadd.f32 %v507, %v630
        %v632 = vpop.f32.mrb[0].mxu0
        %v633 = vpop.f32.mrb[0].mxu0
        %v634 = vadd.f32 %v510, %v633
        %v635 = vpop.f32.mrb[0].mxu0
        %636 = vmatprep.mubr.bf16.mxu0 0
        %637 = vmatmul.mubr.bf16.gmra.mrb[0].mxu0 %v558
        %v638 = vpop.f32.mrb[0].mxu0
        %v639 = vadd.f32 %v515, %v638
        %v640 = vpop.f32.mrb[0].mxu0
        %v641 = vpop.f32.mrb[0].mxu0
        %v642 = vadd.f32 %v518, %v641
        %v643 = vpop.f32.mrb[0].mxu0
        %644 = vmatprep.mubr.bf16.mxu0 0
        %645 = vmatmul.mubr.bf16.gmra.mrb[0].mxu0 %v561
        %v646 = vpop.f32.mrb[0].mxu0
        %v647 = vadd.f32 %v523, %v646
        %v648 = vpop.f32.mrb[0].mxu0
        %v649 = vpop.f32.mrb[0].mxu0
        %v650 = vadd.f32 %v526, %v649
        %v651 = vpop.f32.mrb[0].mxu0
        %652 = vmatprep.mubr.bf16.mxu0 0
        %653 = vmatmul.mubr.bf16.gmra.mrb[0].mxu0 %v564
        %v654 = vpop.f32.mrb[0].mxu0
        %v655 = vadd.f32 %v531, %v654
        %v656 = vpop.f32.mrb[0].mxu0
        %v657 = vpop.f32.mrb[0].mxu0
        %v658 = vadd.f32 %v534, %v657
        %v659 = vpop.f32.mrb[0].mxu0
        %660 = vmatprep.mubr.bf16.mxu0 0
        %661 = vmatmul.mubr.bf16.gmra.mrb[0].mxu0 %v567
        %v662 = vpop.f32.mrb[0].mxu0
        %v663 = vadd.f32 %v539, %v662
        %v664 = vpop.f32.mrb[0].mxu0
        %v665 = vpop.f32.mrb[0].mxu0
        %v666 = vadd.f32 %v542, %v665
        %v667 = vpop.f32.mrb[0].mxu0
        %668 = vdwg.mxu0
        %v669 = vld [vmem:[#allocation2 + $0x2] sm:$0xff]
        %v670 = vld [vmem:[#allocation2 + $0xa] sm:$0xff]
        %v671 = vld [vmem:[#allocation2 + $0x1a] sm:$0xff]
        %v672 = vld [vmem:[#allocation2 + $0x22] sm:$0xff]
        %v673 = vld [vmem:[#allocation2 + $0x32] sm:$0xff]
        %v674 = vld [vmem:[#allocation2 + $0x3a] sm:$0xff]
        %v675 = vld [vmem:[#allocation2 + $0x4a] sm:$0xff]
        %v676 = vld [vmem:[#allocation2 + $0x52] sm:$0xff]
        %v677 = vld [vmem:[#allocation2 + $0x62] sm:$0xff]
        %v678 = vld [vmem:[#allocation2 + $0x6a] sm:$0xff]
        %v679 = vld [vmem:[#allocation2 + $0x7a] sm:$0xff]
        %v680 = vld [vmem:[#allocation2 + $0x82] sm:$0xff]
        %v681 = vld [vmem:[#allocation2 + $0x92] sm:$0xff]
        %v682 = vld [vmem:[#allocation2 + $0x9a] sm:$0xff]
        %v683 = vld [vmem:[#allocation2 + $0xaa] sm:$0xff]
        %v684 = vld [vmem:[#allocation2 + $0xb2] sm:$0xff]
        %v685 = vpack.c.bf16 %v670, %v669
        %v686 = vpack.c.bf16 %v672, %v671
        %v687 = vpack.c.bf16 %v674, %v673
        %v688 = vpack.c.bf16 %v676, %v675
        %v689 = vpack.c.bf16 %v678, %v677
        %v690 = vpack.c.bf16 %v680, %v679
        %v691 = vpack.c.bf16 %v682, %v681
        %v692 = vpack.c.bf16 %v684, %v683
        %s693 = scalar_lea.vmem %s2, 4
        %v694 = vld [vmem:[%s693] sm:$0x3]
        %v696 = vsel %vm306, %v685, 0
        %v699 = vsel %vm306, %v686, 0
        %v702 = vsel %vm306, %v687, 0
        %v705 = vsel %vm306, %v688, 0
        %v708 = vsel %vm306, %v689, 0
        %v711 = vsel %vm306, %v690, 0
        %v714 = vsel %vm306, %v691, 0
        %v717 = vsel %vm306, %v692, 0
        %v720 = vsel %vm444, %v694, 0
        %722 = vmatprep.subr.bf16.mxu0 0
        %723 = vmatpush1.bf16.msra.mxu0 %v720
        %724 = vmatprep.subr.bf16.mxu0 0
        %725 = vmatpush1.bf16.msra.mxu0 0
        %726 = vmatprep.subr.bf16.mxu0 0
        %727 = vmatpush1.bf16.msra.mxu0 0
        %728 = vmatprep.subr.bf16.mxu0 0
        %729 = vmatpush1.bf16.msra.mxu0 0
        %730 = vmatprep.subr.bf16.mxu0 0
        %731 = vmatpush1.bf16.msra.mxu0 0
        %732 = vmatprep.subr.bf16.mxu0 0
        %733 = vmatpush1.bf16.msra.mxu0 0
        %734 = vmatprep.subr.bf16.mxu0 0
        %735 = vmatpush1.bf16.msra.mxu0 0
        %736 = vmatprep.subr.bf16.mxu0 0
        %737 = vmatpush1.bf16.msra.mxu0 0
        %738 = vmatprep.subr.bf16.mxu0 0
        %739 = vmatpush1.bf16.msra.mxu0 0
        %740 = vmatprep.subr.bf16.mxu0 0
        %741 = vmatpush1.bf16.msra.mxu0 0
        %742 = vmatprep.subr.bf16.mxu0 0
        %743 = vmatpush1.bf16.msra.mxu0 0
        %744 = vmatprep.subr.bf16.mxu0 0
        %745 = vmatpush1.bf16.msra.mxu0 0
        %746 = vmatprep.subr.bf16.mxu0 0
        %747 = vmatpush1.bf16.msra.mxu0 0
        %748 = vmatprep.subr.bf16.mxu0 0
        %749 = vmatpush1.bf16.msra.mxu0 0
        %750 = vmatprep.subr.bf16.mxu0 0
        %751 = vmatpush1.bf16.msra.mxu0 0
        %752 = vmatprep.subr.bf16.mxu0 0
        %753 = vmatpush1.bf16.msra.mxu0 0
        %754 = vmatprep.mubr.bf16.mxu0 0
        %755 = vmatmul.mubr.bf16.gmra.mrb[0].mxu0 %v696
        %v756 = vpop.f32.mrb[0].mxu0
        %v757 = vadd.f32 0.0, %v756
        %v758 = vpop.f32.mrb[0].mxu0
        %v759 = vpop.f32.mrb[0].mxu0
        %v760 = vadd.f32 0.0, %v759
        %v761 = vpop.f32.mrb[0].mxu0
        %762 = vmatprep.mubr.bf16.mxu0 0
        %763 = vmatmul.mubr.bf16.gmra.mrb[0].mxu0 %v699
        %v764 = vpop.f32.mrb[0].mxu0
        %v765 = vadd.f32 0.0, %v764
        %v766 = vpop.f32.mrb[0].mxu0
        %v767 = vpop.f32.mrb[0].mxu0
        %v768 = vadd.f32 0.0, %v767
        %v769 = vpop.f32.mrb[0].mxu0
        %770 = vmatprep.mubr.bf16.mxu0 0
        %771 = vmatmul.mubr.bf16.gmra.mrb[0].mxu0 %v702
        %v772 = vpop.f32.mrb[0].mxu0
        %v773 = vadd.f32 0.0, %v772
        %v774 = vpop.f32.mrb[0].mxu0
        %v775 = vpop.f32.mrb[0].mxu0
        %v776 = vadd.f32 0.0, %v775
        %v777 = vpop.f32.mrb[0].mxu0
        %778 = vmatprep.mubr.bf16.mxu0 0
        %779 = vmatmul.mubr.bf16.gmra.mrb[0].mxu0 %v705
        %v780 = vpop.f32.mrb[0].mxu0
        %v781 = vadd.f32 0.0, %v780
        %v782 = vpop.f32.mrb[0].mxu0
        %v783 = vpop.f32.mrb[0].mxu0
        %v784 = vadd.f32 0.0, %v783
        %v785 = vpop.f32.mrb[0].mxu0
        %786 = vmatprep.mubr.bf16.mxu0 0
        %787 = vmatmul.mubr.bf16.gmra.mrb[0].mxu0 %v708
        %v788 = vpop.f32.mrb[0].mxu0
        %v789 = vadd.f32 0.0, %v788
        %v790 = vpop.f32.mrb[0].mxu0
        %v791 = vpop.f32.mrb[0].mxu0
        %v792 = vadd.f32 0.0, %v791
        %v793 = vpop.f32.mrb[0].mxu0
        %794 = vmatprep.mubr.bf16.mxu0 0
        %795 = vmatmul.mubr.bf16.gmra.mrb[0].mxu0 %v711
        %v796 = vpop.f32.mrb[0].mxu0
        %v797 = vadd.f32 0.0, %v796
        %v798 = vpop.f32.mrb[0].mxu0
        %v799 = vpop.f32.mrb[0].mxu0
        %v800 = vadd.f32 0.0, %v799
        %v801 = vpop.f32.mrb[0].mxu0
        %802 = vmatprep.mubr.bf16.mxu0 0
        %803 = vmatmul.mubr.bf16.gmra.mrb[0].mxu0 %v714
        %v804 = vpop.f32.mrb[0].mxu0
        %v805 = vadd.f32 0.0, %v804
        %v806 = vpop.f32.mrb[0].mxu0
        %v807 = vpop.f32.mrb[0].mxu0
        %v808 = vadd.f32 0.0, %v807
        %v809 = vpop.f32.mrb[0].mxu0
        %810 = vmatprep.mubr.bf16.mxu0 0
        %811 = vmatmul.mubr.bf16.gmra.mrb[0].mxu0 %v717
        %v812 = vpop.f32.mrb[0].mxu0
        %v813 = vadd.f32 0.0, %v812
        %v814 = vpop.f32.mrb[0].mxu0
        %v815 = vpop.f32.mrb[0].mxu0
        %v816 = vadd.f32 0.0, %v815
        %v817 = vpop.f32.mrb[0].mxu0
        %818 = vdwg.mxu0
        %v819 = vadd.f32 %v607, %v757
        %v820 = vadd.f32 %v610, %v760
        %v821 = vadd.f32 %v615, %v765
        %v822 = vadd.f32 %v618, %v768
        %v823 = vadd.f32 %v623, %v773
        %v824 = vadd.f32 %v626, %v776
        %v825 = vadd.f32 %v631, %v781
        %v826 = vadd.f32 %v634, %v784
        %v827 = vadd.f32 %v639, %v789
        %v828 = vadd.f32 %v642, %v792
        %v829 = vadd.f32 %v647, %v797
        %v830 = vadd.f32 %v650, %v800
        %v831 = vadd.f32 %v655, %v805
        %v832 = vadd.f32 %v658, %v808
        %v833 = vadd.f32 %v663, %v813
        %v834 = vadd.f32 %v666, %v816
        %v835 = vld [vmem:[%s305] sm:$0xff]
        %v836 = vld [vmem:[%s305 + $0x8] sm:$0xff]
        %v837 = vld [vmem:[%s305 + $0x18] sm:$0xff]
        %v838 = vld [vmem:[%s305 + $0x20] sm:$0xff]
        %v839 = vld [vmem:[%s305 + $0x30] sm:$0xff]
        %v840 = vld [vmem:[%s305 + $0x38] sm:$0xff]
        %v841 = vld [vmem:[%s305 + $0x48] sm:$0xff]
        %v842 = vld [vmem:[%s305 + $0x50] sm:$0xff]
        %v843 = vld [vmem:[%s305 + $0x60] sm:$0xff]
        %v844 = vld [vmem:[%s305 + $0x68] sm:$0xff]
        %v845 = vld [vmem:[%s305 + $0x78] sm:$0xff]
        %v846 = vld [vmem:[%s305 + $0x80] sm:$0xff]
        %v847 = vld [vmem:[%s305 + $0x90] sm:$0xff]
        %v848 = vld [vmem:[%s305 + $0x98] sm:$0xff]
        %v849 = vld [vmem:[%s305 + $0xa8] sm:$0xff]
        %v850 = vld [vmem:[%s305 + $0xb0] sm:$0xff]
        %v851 = vpack.c.bf16 %v836, %v835
        %v852 = vpack.c.bf16 %v838, %v837
        %v853 = vpack.c.bf16 %v840, %v839
        %v854 = vpack.c.bf16 %v842, %v841
        %v855 = vpack.c.bf16 %v844, %v843
        %v856 = vpack.c.bf16 %v846, %v845
        %v857 = vpack.c.bf16 %v848, %v847
        %v858 = vpack.c.bf16 %v850, %v849
        %s859 = scalar_lea.vmem %s2, 6
        %v860 = vld [vmem:[%s859] sm:$0x3]
        %v862 = vsel %vm306, %v851, 0
        %v865 = vsel %vm306, %v852, 0
        %v868 = vsel %vm306, %v853, 0
        %v871 = vsel %vm306, %v854, 0
        %v874 = vsel %vm306, %v855, 0
        %v877 = vsel %vm306, %v856, 0
        %v880 = vsel %vm306, %v857, 0
        %v883 = vsel %vm306, %v858, 0
        %v886 = vsel %vm444, %v860, 0
        %888 = vmatprep.subr.bf16.mxu0 0
        %889 = vmatpush1.bf16.msra.mxu0 %v886
        %890 = vmatprep.subr.bf16.mxu0 0
        %891 = vmatpush1.bf16.msra.mxu0 0
        %892 = vmatprep.subr.bf16.mxu0 0
        %893 = vmatpush1.bf16.msra.mxu0 0
        %894 = vmatprep.subr.bf16.mxu0 0
        %895 = vmatpush1.bf16.msra.mxu0 0
        %896 = vmatprep.subr.bf16.mxu0 0
        %897 = vmatpush1.bf16.msra.mxu0 0
        %898 = vmatprep.subr.bf16.mxu0 0
        %899 = vmatpush1.bf16.msra.mxu0 0
        %900 = vmatprep.subr.bf16.mxu0 0
        %901 = vmatpush1.bf16.msra.mxu0 0
        %902 = vmatprep.subr.bf16.mxu0 0
        %903 = vmatpush1.bf16.msra.mxu0 0
        %904 = vmatprep.subr.bf16.mxu0 0
        %905 = vmatpush1.bf16.msra.mxu0 0
        %906 = vmatprep.subr.bf16.mxu0 0
        %907 = vmatpush1.bf16.msra.mxu0 0
        %908 = vmatprep.subr.bf16.mxu0 0
        %909 = vmatpush1.bf16.msra.mxu0 0
        %910 = vmatprep.subr.bf16.mxu0 0
        %911 = vmatpush1.bf16.msra.mxu0 0
        %912 = vmatprep.subr.bf16.mxu0 0
        %913 = vmatpush1.bf16.msra.mxu0 0
        %914 = vmatprep.subr.bf16.mxu0 0
        %915 = vmatpush1.bf16.msra.mxu0 0
        %916 = vmatprep.subr.bf16.mxu0 0
        %917 = vmatpush1.bf16.msra.mxu0 0
        %918 = vmatprep.subr.bf16.mxu0 0
        %919 = vmatpush1.bf16.msra.mxu0 0
        %920 = vmatprep.mubr.bf16.mxu0 0
        %921 = vmatmul.mubr.bf16.gmra.mrb[0].mxu0 %v862
        %v922 = vpop.f32.mrb[0].mxu0
        %v923 = vadd.f32 0.0, %v922
        %v924 = vpop.f32.mrb[0].mxu0
        %v925 = vpop.f32.mrb[0].mxu0
        %v926 = vadd.f32 0.0, %v925
        %v927 = vpop.f32.mrb[0].mxu0
        %928 = vmatprep.mubr.bf16.mxu0 0
        %929 = vmatmul.mubr.bf16.gmra.mrb[0].mxu0 %v865
        %v930 = vpop.f32.mrb[0].mxu0
        %v931 = vadd.f32 0.0, %v930
        %v932 = vpop.f32.mrb[0].mxu0
        %v933 = vpop.f32.mrb[0].mxu0
        %v934 = vadd.f32 0.0, %v933
        %v935 = vpop.f32.mrb[0].mxu0
        %936 = vmatprep.mubr.bf16.mxu0 0
        %937 = vmatmul.mubr.bf16.gmra.mrb[0].mxu0 %v868
        %v938 = vpop.f32.mrb[0].mxu0
        %v939 = vadd.f32 0.0, %v938
        %v940 = vpop.f32.mrb[0].mxu0
        %v941 = vpop.f32.mrb[0].mxu0
        %v942 = vadd.f32 0.0, %v941
        %v943 = vpop.f32.mrb[0].mxu0
        %944 = vmatprep.mubr.bf16.mxu0 0
        %945 = vmatmul.mubr.bf16.gmra.mrb[0].mxu0 %v871
        %v946 = vpop.f32.mrb[0].mxu0
        %v947 = vadd.f32 0.0, %v946
        %v948 = vpop.f32.mrb[0].mxu0
        %v949 = vpop.f32.mrb[0].mxu0
        %v950 = vadd.f32 0.0, %v949
        %v951 = vpop.f32.mrb[0].mxu0
        %952 = vmatprep.mubr.bf16.mxu0 0
        %953 = vmatmul.mubr.bf16.gmra.mrb[0].mxu0 %v874
        %v954 = vpop.f32.mrb[0].mxu0
        %v955 = vadd.f32 0.0, %v954
        %v956 = vpop.f32.mrb[0].mxu0
        %v957 = vpop.f32.mrb[0].mxu0
        %v958 = vadd.f32 0.0, %v957
        %v959 = vpop.f32.mrb[0].mxu0
        %960 = vmatprep.mubr.bf16.mxu0 0
        %961 = vmatmul.mubr.bf16.gmra.mrb[0].mxu0 %v877
        %v962 = vpop.f32.mrb[0].mxu0
        %v963 = vadd.f32 0.0, %v962
        %v964 = vpop.f32.mrb[0].mxu0
        %v965 = vpop.f32.mrb[0].mxu0
        %v966 = vadd.f32 0.0, %v965
        %v967 = vpop.f32.mrb[0].mxu0
        %968 = vmatprep.mubr.bf16.mxu0 0
        %969 = vmatmul.mubr.bf16.gmra.mrb[0].mxu0 %v880
        %v970 = vpop.f32.mrb[0].mxu0
        %v971 = vadd.f32 0.0, %v970
        %v972 = vpop.f32.mrb[0].mxu0
        %v973 = vpop.f32.mrb[0].mxu0
        %v974 = vadd.f32 0.0, %v973
        %v975 = vpop.f32.mrb[0].mxu0
        %976 = vmatprep.mubr.bf16.mxu0 0
        %977 = vmatmul.mubr.bf16.gmra.mrb[0].mxu0 %v883
        %v978 = vpop.f32.mrb[0].mxu0
        %v979 = vadd.f32 0.0, %v978
        %v980 = vpop.f32.mrb[0].mxu0
        %v981 = vpop.f32.mrb[0].mxu0
        %v982 = vadd.f32 0.0, %v981
        %v983 = vpop.f32.mrb[0].mxu0
        %984 = vdwg.mxu0
        %v985 = vadd.f32 %v819, %v923
        %v986 = vadd.f32 %v820, %v926
        %v987 = vadd.f32 %v821, %v931
        %v988 = vadd.f32 %v822, %v934
        %v989 = vadd.f32 %v823, %v939
        %v990 = vadd.f32 %v824, %v942
        %v991 = vadd.f32 %v825, %v947
        %v992 = vadd.f32 %v826, %v950
        %v993 = vadd.f32 %v827, %v955
        %v994 = vadd.f32 %v828, %v958
        %v995 = vadd.f32 %v829, %v963
        %v996 = vadd.f32 %v830, %v966
        %v997 = vadd.f32 %v831, %v971
        %v998 = vadd.f32 %v832, %v974
        %v999 = vadd.f32 %v833, %v979
        %v1000 = vadd.f32 %v834, %v982
        %v1001 = vld [vmem:[%s305 + $0x1] sm:$0xff]
        %v1002 = vld [vmem:[%s305 + $0x9] sm:$0xff]
        %v1003 = vld [vmem:[%s305 + $0x19] sm:$0xff]
        %v1004 = vld [vmem:[%s305 + $0x21] sm:$0xff]
        %v1005 = vld [vmem:[%s305 + $0x31] sm:$0xff]
        %v1006 = vld [vmem:[%s305 + $0x39] sm:$0xff]
        %v1007 = vld [vmem:[%s305 + $0x49] sm:$0xff]
        %v1008 = vld [vmem:[%s305 + $0x51] sm:$0xff]
        %v1009 = vld [vmem:[%s305 + $0x61] sm:$0xff]
        %v1010 = vld [vmem:[%s305 + $0x69] sm:$0xff]
        %v1011 = vld [vmem:[%s305 + $0x79] sm:$0xff]
        %v1012 = vld [vmem:[%s305 + $0x81] sm:$0xff]
        %v1013 = vld [vmem:[%s305 + $0x91] sm:$0xff]
        %v1014 = vld [vmem:[%s305 + $0x99] sm:$0xff]
        %v1015 = vld [vmem:[%s305 + $0xa9] sm:$0xff]
        %v1016 = vld [vmem:[%s305 + $0xb1] sm:$0xff]
        %v1017 = vpack.c.bf16 %v1002, %v1001
        %v1018 = vpack.c.bf16 %v1004, %v1003
        %v1019 = vpack.c.bf16 %v1006, %v1005
        %v1020 = vpack.c.bf16 %v1008, %v1007
        %v1021 = vpack.c.bf16 %v1010, %v1009
        %v1022 = vpack.c.bf16 %v1012, %v1011
        %v1023 = vpack.c.bf16 %v1014, %v1013
        %v1024 = vpack.c.bf16 %v1016, %v1015
        %s1025 = scalar_lea.vmem %s2, 8
        %v1026 = vld [vmem:[%s1025] sm:$0x3]
        %v1028 = vsel %vm306, %v1017, 0
        %v1031 = vsel %vm306, %v1018, 0
        %v1034 = vsel %vm306, %v1019, 0
        %v1037 = vsel %vm306, %v1020, 0
        %v1040 = vsel %vm306, %v1021, 0
        %v1043 = vsel %vm306, %v1022, 0
        %v1046 = vsel %vm306, %v1023, 0
        %v1049 = vsel %vm306, %v1024, 0
        %v1052 = vsel %vm444, %v1026, 0
        %1054 = vmatprep.subr.bf16.mxu0 0
        %1055 = vmatpush1.bf16.msra.mxu0 %v1052
        %1056 = vmatprep.subr.bf16.mxu0 0
        %1057 = vmatpush1.bf16.msra.mxu0 0
        %1058 = vmatprep.subr.bf16.mxu0 0
        %1059 = vmatpush1.bf16.msra.mxu0 0
        %1060 = vmatprep.subr.bf16.mxu0 0
        %1061 = vmatpush1.bf16.msra.mxu0 0
        %1062 = vmatprep.subr.bf16.mxu0 0
        %1063 = vmatpush1.bf16.msra.mxu0 0
        %1064 = vmatprep.subr.bf16.mxu0 0
        %1065 = vmatpush1.bf16.msra.mxu0 0
        %1066 = vmatprep.subr.bf16.mxu0 0
        %1067 = vmatpush1.bf16.msra.mxu0 0
        %1068 = vmatprep.subr.bf16.mxu0 0
        %1069 = vmatpush1.bf16.msra.mxu0 0
        %1070 = vmatprep.subr.bf16.mxu0 0
        %1071 = vmatpush1.bf16.msra.mxu0 0
        %1072 = vmatprep.subr.bf16.mxu0 0
        %1073 = vmatpush1.bf16.msra.mxu0 0
        %1074 = vmatprep.subr.bf16.mxu0 0
        %1075 = vmatpush1.bf16.msra.mxu0 0
        %1076 = vmatprep.subr.bf16.mxu0 0
        %1077 = vmatpush1.bf16.msra.mxu0 0
        %1078 = vmatprep.subr.bf16.mxu0 0
        %1079 = vmatpush1.bf16.msra.mxu0 0
        %1080 = vmatprep.subr.bf16.mxu0 0
        %1081 = vmatpush1.bf16.msra.mxu0 0
        %1082 = vmatprep.subr.bf16.mxu0 0
        %1083 = vmatpush1.bf16.msra.mxu0 0
        %1084 = vmatprep.subr.bf16.mxu0 0
        %1085 = vmatpush1.bf16.msra.mxu0 0
        %1086 = vmatprep.mubr.bf16.mxu0 0
        %1087 = vmatmul.mubr.bf16.gmra.mrb[0].mxu0 %v1028
        %v1088 = vpop.f32.mrb[0].mxu0
        %v1089 = vadd.f32 0.0, %v1088
        %v1090 = vpop.f32.mrb[0].mxu0
        %v1091 = vpop.f32.mrb[0].mxu0
        %v1092 = vadd.f32 0.0, %v1091
        %v1093 = vpop.f32.mrb[0].mxu0
        %1094 = vmatprep.mubr.bf16.mxu0 0
        %1095 = vmatmul.mubr.bf16.gmra.mrb[0].mxu0 %v1031
        %v1096 = vpop.f32.mrb[0].mxu0
        %v1097 = vadd.f32 0.0, %v1096
        %v1098 = vpop.f32.mrb[0].mxu0
        %v1099 = vpop.f32.mrb[0].mxu0
        %v1100 = vadd.f32 0.0, %v1099
        %v1101 = vpop.f32.mrb[0].mxu0
        %1102 = vmatprep.mubr.bf16.mxu0 0
        %1103 = vmatmul.mubr.bf16.gmra.mrb[0].mxu0 %v1034
        %v1104 = vpop.f32.mrb[0].mxu0
        %v1105 = vadd.f32 0.0, %v1104
        %v1106 = vpop.f32.mrb[0].mxu0
        %v1107 = vpop.f32.mrb[0].mxu0
        %v1108 = vadd.f32 0.0, %v1107
        %v1109 = vpop.f32.mrb[0].mxu0
        %1110 = vmatprep.mubr.bf16.mxu0 0
        %1111 = vmatmul.mubr.bf16.gmra.mrb[0].mxu0 %v1037
        %v1112 = vpop.f32.mrb[0].mxu0
        %v1113 = vadd.f32 0.0, %v1112
        %v1114 = vpop.f32.mrb[0].mxu0
        %v1115 = vpop.f32.mrb[0].mxu0
        %v1116 = vadd.f32 0.0, %v1115
        %v1117 = vpop.f32.mrb[0].mxu0
        %1118 = vmatprep.mubr.bf16.mxu0 0
        %1119 = vmatmul.mubr.bf16.gmra.mrb[0].mxu0 %v1040
        %v1120 = vpop.f32.mrb[0].mxu0
        %v1121 = vadd.f32 0.0, %v1120
        %v1122 = vpop.f32.mrb[0].mxu0
        %v1123 = vpop.f32.mrb[0].mxu0
        %v1124 = vadd.f32 0.0, %v1123
        %v1125 = vpop.f32.mrb[0].mxu0
        %1126 = vmatprep.mubr.bf16.mxu0 0
        %1127 = vmatmul.mubr.bf16.gmra.mrb[0].mxu0 %v1043
        %v1128 = vpop.f32.mrb[0].mxu0
        %v1129 = vadd.f32 0.0, %v1128
        %v1130 = vpop.f32.mrb[0].mxu0
        %v1131 = vpop.f32.mrb[0].mxu0
        %v1132 = vadd.f32 0.0, %v1131
        %v1133 = vpop.f32.mrb[0].mxu0
        %1134 = vmatprep.mubr.bf16.mxu0 0
        %1135 = vmatmul.mubr.bf16.gmra.mrb[0].mxu0 %v1046
        %v1136 = vpop.f32.mrb[0].mxu0
        %v1137 = vadd.f32 0.0, %v1136
        %v1138 = vpop.f32.mrb[0].mxu0
        %v1139 = vpop.f32.mrb[0].mxu0
        %v1140 = vadd.f32 0.0, %v1139
        %v1141 = vpop.f32.mrb[0].mxu0
        %1142 = vmatprep.mubr.bf16.mxu0 0
        %1143 = vmatmul.mubr.bf16.gmra.mrb[0].mxu0 %v1049
        %v1144 = vpop.f32.mrb[0].mxu0
        %v1145 = vadd.f32 0.0, %v1144
        %v1146 = vpop.f32.mrb[0].mxu0
        %v1147 = vpop.f32.mrb[0].mxu0
        %v1148 = vadd.f32 0.0, %v1147
        %v1149 = vpop.f32.mrb[0].mxu0
        %1150 = vdwg.mxu0
        %v1151 = vadd.f32 %v985, %v1089
        %v1152 = vadd.f32 %v986, %v1092
        %v1153 = vadd.f32 %v987, %v1097
        %v1154 = vadd.f32 %v988, %v1100
        %v1155 = vadd.f32 %v989, %v1105
        %v1156 = vadd.f32 %v990, %v1108
        %v1157 = vadd.f32 %v991, %v1113
        %v1158 = vadd.f32 %v992, %v1116
        %v1159 = vadd.f32 %v993, %v1121
        %v1160 = vadd.f32 %v994, %v1124
        %v1161 = vadd.f32 %v995, %v1129
        %v1162 = vadd.f32 %v996, %v1132
        %v1163 = vadd.f32 %v997, %v1137
        %v1164 = vadd.f32 %v998, %v1140
        %v1165 = vadd.f32 %v999, %v1145
        %v1166 = vadd.f32 %v1000, %v1148
        %v1167 = vld [vmem:[%s305 + $0x2] sm:$0xff]
        %v1168 = vld [vmem:[%s305 + $0xa] sm:$0xff]
        %v1169 = vld [vmem:[%s305 + $0x1a] sm:$0xff]
        %v1170 = vld [vmem:[%s305 + $0x22] sm:$0xff]
        %v1171 = vld [vmem:[%s305 + $0x32] sm:$0xff]
        %v1172 = vld [vmem:[%s305 + $0x3a] sm:$0xff]
        %v1173 = vld [vmem:[%s305 + $0x4a] sm:$0xff]
        %v1174 = vld [vmem:[%s305 + $0x52] sm:$0xff]
        %v1175 = vld [vmem:[%s305 + $0x62] sm:$0xff]
        %v1176 = vld [vmem:[%s305 + $0x6a] sm:$0xff]
        %v1177 = vld [vmem:[%s305 + $0x7a] sm:$0xff]
        %v1178 = vld [vmem:[%s305 + $0x82] sm:$0xff]
        %v1179 = vld [vmem:[%s305 + $0x92] sm:$0xff]
        %v1180 = vld [vmem:[%s305 + $0x9a] sm:$0xff]
        %v1181 = vld [vmem:[%s305 + $0xaa] sm:$0xff]
        %v1182 = vld [vmem:[%s305 + $0xb2] sm:$0xff]
        %v1183 = vpack.c.bf16 %v1168, %v1167
        %v1184 = vpack.c.bf16 %v1170, %v1169
        %v1185 = vpack.c.bf16 %v1172, %v1171
        %v1186 = vpack.c.bf16 %v1174, %v1173
        %v1187 = vpack.c.bf16 %v1176, %v1175
        %v1188 = vpack.c.bf16 %v1178, %v1177
        %v1189 = vpack.c.bf16 %v1180, %v1179
        %v1190 = vpack.c.bf16 %v1182, %v1181
        %s1191 = scalar_lea.vmem %s2, 10
        %v1192 = vld [vmem:[%s1191] sm:$0x3]
        %v1194 = vsel %vm306, %v1183, 0
        %v1197 = vsel %vm306, %v1184, 0
        %v1200 = vsel %vm306, %v1185, 0
        %v1203 = vsel %vm306, %v1186, 0
        %v1206 = vsel %vm306, %v1187, 0
        %v1209 = vsel %vm306, %v1188, 0
        %v1212 = vsel %vm306, %v1189, 0
        %v1215 = vsel %vm306, %v1190, 0
        %v1218 = vsel %vm444, %v1192, 0
        %1220 = vmatprep.subr.bf16.mxu0 0
        %1221 = vmatpush1.bf16.msra.mxu0 %v1218
        %1222 = vmatprep.subr.bf16.mxu0 0
        %1223 = vmatpush1.bf16.msra.mxu0 0
        %1224 = vmatprep.subr.bf16.mxu0 0
        %1225 = vmatpush1.bf16.msra.mxu0 0
        %1226 = vmatprep.subr.bf16.mxu0 0
        %1227 = vmatpush1.bf16.msra.mxu0 0
        %1228 = vmatprep.subr.bf16.mxu0 0
        %1229 = vmatpush1.bf16.msra.mxu0 0
        %1230 = vmatprep.subr.bf16.mxu0 0
        %1231 = vmatpush1.bf16.msra.mxu0 0
        %1232 = vmatprep.subr.bf16.mxu0 0
        %1233 = vmatpush1.bf16.msra.mxu0 0
        %1234 = vmatprep.subr.bf16.mxu0 0
        %1235 = vmatpush1.bf16.msra.mxu0 0
        %1236 = vmatprep.subr.bf16.mxu0 0
        %1237 = vmatpush1.bf16.msra.mxu0 0
        %1238 = vmatprep.subr.bf16.mxu0 0
        %1239 = vmatpush1.bf16.msra.mxu0 0
        %1240 = vmatprep.subr.bf16.mxu0 0
        %1241 = vmatpush1.bf16.msra.mxu0 0
        %1242 = vmatprep.subr.bf16.mxu0 0
        %1243 = vmatpush1.bf16.msra.mxu0 0
        %1244 = vmatprep.subr.bf16.mxu0 0
        %1245 = vmatpush1.bf16.msra.mxu0 0
        %1246 = vmatprep.subr.bf16.mxu0 0
        %1247 = vmatpush1.bf16.msra.mxu0 0
        %1248 = vmatprep.subr.bf16.mxu0 0
        %1249 = vmatpush1.bf16.msra.mxu0 0
        %1250 = vmatprep.subr.bf16.mxu0 0
        %1251 = vmatpush1.bf16.msra.mxu0 0
        %1252 = vmatprep.mubr.bf16.mxu0 0
        %1253 = vmatmul.mubr.bf16.gmra.mrb[0].mxu0 %v1194
        %v1254 = vpop.f32.mrb[0].mxu0
        %v1255 = vadd.f32 0.0, %v1254
        %v1256 = vpop.f32.mrb[0].mxu0
        %v1257 = vpop.f32.mrb[0].mxu0
        %v1258 = vadd.f32 0.0, %v1257
        %v1259 = vpop.f32.mrb[0].mxu0
        %1260 = vmatprep.mubr.bf16.mxu0 0
        %1261 = vmatmul.mubr.bf16.gmra.mrb[0].mxu0 %v1197
        %v1262 = vpop.f32.mrb[0].mxu0
        %v1263 = vadd.f32 0.0, %v1262
        %v1264 = vpop.f32.mrb[0].mxu0
        %v1265 = vpop.f32.mrb[0].mxu0
        %v1266 = vadd.f32 0.0, %v1265
        %v1267 = vpop.f32.mrb[0].mxu0
        %1268 = vmatprep.mubr.bf16.mxu0 0
        %1269 = vmatmul.mubr.bf16.gmra.mrb[0].mxu0 %v1200
        %v1270 = vpop.f32.mrb[0].mxu0
        %v1271 = vadd.f32 0.0, %v1270
        %v1272 = vpop.f32.mrb[0].mxu0
        %v1273 = vpop.f32.mrb[0].mxu0
        %v1274 = vadd.f32 0.0, %v1273
        %v1275 = vpop.f32.mrb[0].mxu0
        %1276 = vmatprep.mubr.bf16.mxu0 0
        %1277 = vmatmul.mubr.bf16.gmra.mrb[0].mxu0 %v1203
        %v1278 = vpop.f32.mrb[0].mxu0
        %v1279 = vadd.f32 0.0, %v1278
        %v1280 = vpop.f32.mrb[0].mxu0
        %v1281 = vpop.f32.mrb[0].mxu0
        %v1282 = vadd.f32 0.0, %v1281
        %v1283 = vpop.f32.mrb[0].mxu0
        %1284 = vmatprep.mubr.bf16.mxu0 0
        %1285 = vmatmul.mubr.bf16.gmra.mrb[0].mxu0 %v1206
        %v1286 = vpop.f32.mrb[0].mxu0
        %v1287 = vadd.f32 0.0, %v1286
        %v1288 = vpop.f32.mrb[0].mxu0
        %v1289 = vpop.f32.mrb[0].mxu0
        %v1290 = vadd.f32 0.0, %v1289
        %v1291 = vpop.f32.mrb[0].mxu0
        %1292 = vmatprep.mubr.bf16.mxu0 0
        %1293 = vmatmul.mubr.bf16.gmra.mrb[0].mxu0 %v1209
        %v1294 = vpop.f32.mrb[0].mxu0
        %v1295 = vadd.f32 0.0, %v1294
        %v1296 = vpop.f32.mrb[0].mxu0
        %v1297 = vpop.f32.mrb[0].mxu0
        %v1298 = vadd.f32 0.0, %v1297
        %v1299 = vpop.f32.mrb[0].mxu0
        %1300 = vmatprep.mubr.bf16.mxu0 0
        %1301 = vmatmul.mubr.bf16.gmra.mrb[0].mxu0 %v1212
        %v1302 = vpop.f32.mrb[0].mxu0
        %v1303 = vadd.f32 0.0, %v1302
        %v1304 = vpop.f32.mrb[0].mxu0
        %v1305 = vpop.f32.mrb[0].mxu0
        %v1306 = vadd.f32 0.0, %v1305
        %v1307 = vpop.f32.mrb[0].mxu0
        %1308 = vmatprep.mubr.bf16.mxu0 0
        %1309 = vmatmul.mubr.bf16.gmra.mrb[0].mxu0 %v1215
        %v1310 = vpop.f32.mrb[0].mxu0
        %v1311 = vadd.f32 0.0, %v1310
        %v1312 = vpop.f32.mrb[0].mxu0
        %v1313 = vpop.f32.mrb[0].mxu0
        %v1314 = vadd.f32 0.0, %v1313
        %v1315 = vpop.f32.mrb[0].mxu0
        %1316 = vdwg.mxu0
        %v1317 = vadd.f32 %v1151, %v1255
        %v1318 = vadd.f32 %v1152, %v1258
        %v1319 = vadd.f32 %v1153, %v1263
        %v1320 = vadd.f32 %v1154, %v1266
        %v1321 = vadd.f32 %v1155, %v1271
        %v1322 = vadd.f32 %v1156, %v1274
        %v1323 = vadd.f32 %v1157, %v1279
        %v1324 = vadd.f32 %v1158, %v1282
        %v1325 = vadd.f32 %v1159, %v1287
        %v1326 = vadd.f32 %v1160, %v1290
        %v1327 = vadd.f32 %v1161, %v1295
        %v1328 = vadd.f32 %v1162, %v1298
        %v1329 = vadd.f32 %v1163, %v1303
        %v1330 = vadd.f32 %v1164, %v1306
        %v1331 = vadd.f32 %v1165, %v1311
        %v1332 = vadd.f32 %v1166, %v1314
        %s1333 = scalar_lea.vmem [#allocation2], 48
        %v1334 = vld [vmem:[%s1333] sm:$0xff]
        %v1335 = vld [vmem:[%s1333 + $0x8] sm:$0xff]
        %v1336 = vld [vmem:[%s1333 + $0x18] sm:$0xff]
        %v1337 = vld [vmem:[%s1333 + $0x20] sm:$0xff]
        %v1338 = vld [vmem:[%s1333 + $0x30] sm:$0xff]
        %v1339 = vld [vmem:[%s1333 + $0x38] sm:$0xff]
        %v1340 = vld [vmem:[%s1333 + $0x48] sm:$0xff]
        %v1341 = vld [vmem:[%s1333 + $0x50] sm:$0xff]
        %v1342 = vld [vmem:[%s1333 + $0x60] sm:$0xff]
        %v1343 = vld [vmem:[%s1333 + $0x68] sm:$0xff]
        %v1344 = vld [vmem:[%s1333 + $0x78] sm:$0xff]
        %v1345 = vld [vmem:[%s1333 + $0x80] sm:$0xff]
        %v1346 = vld [vmem:[%s1333 + $0x90] sm:$0xff]
        %v1347 = vld [vmem:[%s1333 + $0x98] sm:$0xff]
        %v1348 = vld [vmem:[%s1333 + $0xa8] sm:$0xff]
        %v1349 = vld [vmem:[%s1333 + $0xb0] sm:$0xff]
        %v1350 = vpack.c.bf16 %v1335, %v1334
        %v1351 = vpack.c.bf16 %v1337, %v1336
        %v1352 = vpack.c.bf16 %v1339, %v1338
        %v1353 = vpack.c.bf16 %v1341, %v1340
        %v1354 = vpack.c.bf16 %v1343, %v1342
        %v1355 = vpack.c.bf16 %v1345, %v1344
        %v1356 = vpack.c.bf16 %v1347, %v1346
        %v1357 = vpack.c.bf16 %v1349, %v1348
        %s1358 = scalar_lea.vmem %s2, 12
        %v1359 = vld [vmem:[%s1358] sm:$0x3]
        %v1361 = vsel %vm306, %v1350, 0
        %v1364 = vsel %vm306, %v1351, 0
        %v1367 = vsel %vm306, %v1352, 0
        %v1370 = vsel %vm306, %v1353, 0
        %v1373 = vsel %vm306, %v1354, 0
        %v1376 = vsel %vm306, %v1355, 0
        %v1379 = vsel %vm306, %v1356, 0
        %v1382 = vsel %vm306, %v1357, 0
        %v1385 = vsel %vm444, %v1359, 0
        %1387 = vmatprep.subr.bf16.mxu0 0
        %1388 = vmatpush1.bf16.msra.mxu0 %v1385
        %1389 = vmatprep.subr.bf16.mxu0 0
        %1390 = vmatpush1.bf16.msra.mxu0 0
        %1391 = vmatprep.subr.bf16.mxu0 0
        %1392 = vmatpush1.bf16.msra.mxu0 0
        %1393 = vmatprep.subr.bf16.mxu0 0
        %1394 = vmatpush1.bf16.msra.mxu0 0
        %1395 = vmatprep.subr.bf16.mxu0 0
        %1396 = vmatpush1.bf16.msra.mxu0 0
        %1397 = vmatprep.subr.bf16.mxu0 0
        %1398 = vmatpush1.bf16.msra.mxu0 0
        %1399 = vmatprep.subr.bf16.mxu0 0
        %1400 = vmatpush1.bf16.msra.mxu0 0
        %1401 = vmatprep.subr.bf16.mxu0 0
        %1402 = vmatpush1.bf16.msra.mxu0 0
        %1403 = vmatprep.subr.bf16.mxu0 0
        %1404 = vmatpush1.bf16.msra.mxu0 0
        %1405 = vmatprep.subr.bf16.mxu0 0
        %1406 = vmatpush1.bf16.msra.mxu0 0
        %1407 = vmatprep.subr.bf16.mxu0 0
        %1408 = vmatpush1.bf16.msra.mxu0 0
        %1409 = vmatprep.subr.bf16.mxu0 0
        %1410 = vmatpush1.bf16.msra.mxu0 0
        %1411 = vmatprep.subr.bf16.mxu0 0
        %1412 = vmatpush1.bf16.msra.mxu0 0
        %1413 = vmatprep.subr.bf16.mxu0 0
        %1414 = vmatpush1.bf16.msra.mxu0 0
        %1415 = vmatprep.subr.bf16.mxu0 0
        %1416 = vmatpush1.bf16.msra.mxu0 0
        %1417 = vmatprep.subr.bf16.mxu0 0
        %1418 = vmatpush1.bf16.msra.mxu0 0
        %1419 = vmatprep.mubr.bf16.mxu0 0
        %1420 = vmatmul.mubr.bf16.gmra.mrb[0].mxu0 %v1361
        %v1421 = vpop.f32.mrb[0].mxu0
        %v1422 = vadd.f32 0.0, %v1421
        %v1423 = vpop.f32.mrb[0].mxu0
        %v1424 = vpop.f32.mrb[0].mxu0
        %v1425 = vadd.f32 0.0, %v1424
        %v1426 = vpop.f32.mrb[0].mxu0
        %1427 = vmatprep.mubr.bf16.mxu0 0
        %1428 = vmatmul.mubr.bf16.gmra.mrb[0].mxu0 %v1364
        %v1429 = vpop.f32.mrb[0].mxu0
        %v1430 = vadd.f32 0.0, %v1429
        %v1431 = vpop.f32.mrb[0].mxu0
        %v1432 = vpop.f32.mrb[0].mxu0
        %v1433 = vadd.f32 0.0, %v1432
        %v1434 = vpop.f32.mrb[0].mxu0
        %1435 = vmatprep.mubr.bf16.mxu0 0
        %1436 = vmatmul.mubr.bf16.gmra.mrb[0].mxu0 %v1367
        %v1437 = vpop.f32.mrb[0].mxu0
        %v1438 = vadd.f32 0.0, %v1437
        %v1439 = vpop.f32.mrb[0].mxu0
        %v1440 = vpop.f32.mrb[0].mxu0
        %v1441 = vadd.f32 0.0, %v1440
        %v1442 = vpop.f32.mrb[0].mxu0
        %1443 = vmatprep.mubr.bf16.mxu0 0
        %1444 = vmatmul.mubr.bf16.gmra.mrb[0].mxu0 %v1370
        %v1445 = vpop.f32.mrb[0].mxu0
        %v1446 = vadd.f32 0.0, %v1445
        %v1447 = vpop.f32.mrb[0].mxu0
        %v1448 = vpop.f32.mrb[0].mxu0
        %v1449 = vadd.f32 0.0, %v1448
        %v1450 = vpop.f32.mrb[0].mxu0
        %1451 = vmatprep.mubr.bf16.mxu0 0
        %1452 = vmatmul.mubr.bf16.gmra.mrb[0].mxu0 %v1373
        %v1453 = vpop.f32.mrb[0].mxu0
        %v1454 = vadd.f32 0.0, %v1453
        %v1455 = vpop.f32.mrb[0].mxu0
        %v1456 = vpop.f32.mrb[0].mxu0
        %v1457 = vadd.f32 0.0, %v1456
        %v1458 = vpop.f32.mrb[0].mxu0
        %1459 = vmatprep.mubr.bf16.mxu0 0
        %1460 = vmatmul.mubr.bf16.gmra.mrb[0].mxu0 %v1376
        %v1461 = vpop.f32.mrb[0].mxu0
        %v1462 = vadd.f32 0.0, %v1461
        %v1463 = vpop.f32.mrb[0].mxu0
        %v1464 = vpop.f32.mrb[0].mxu0
        %v1465 = vadd.f32 0.0, %v1464
        %v1466 = vpop.f32.mrb[0].mxu0
        %1467 = vmatprep.mubr.bf16.mxu0 0
        %1468 = vmatmul.mubr.bf16.gmra.mrb[0].mxu0 %v1379
        %v1469 = vpop.f32.mrb[0].mxu0
        %v1470 = vadd.f32 0.0, %v1469
        %v1471 = vpop.f32.mrb[0].mxu0
        %v1472 = vpop.f32.mrb[0].mxu0
        %v1473 = vadd.f32 0.0, %v1472
        %v1474 = vpop.f32.mrb[0].mxu0
        %1475 = vmatprep.mubr.bf16.mxu0 0
        %1476 = vmatmul.mubr.bf16.gmra.mrb[0].mxu0 %v1382
        %v1477 = vpop.f32.mrb[0].mxu0
        %v1478 = vadd.f32 0.0, %v1477
        %v1479 = vpop.f32.mrb[0].mxu0
        %v1480 = vpop.f32.mrb[0].mxu0
        %v1481 = vadd.f32 0.0, %v1480
        %v1482 = vpop.f32.mrb[0].mxu0
        %1483 = vdwg.mxu0
        %v1484 = vadd.f32 %v1317, %v1422
        %v1485 = vadd.f32 %v1318, %v1425
        %v1486 = vadd.f32 %v1319, %v1430
        %v1487 = vadd.f32 %v1320, %v1433
        %v1488 = vadd.f32 %v1321, %v1438
        %v1489 = vadd.f32 %v1322, %v1441
        %v1490 = vadd.f32 %v1323, %v1446
        %v1491 = vadd.f32 %v1324, %v1449
        %v1492 = vadd.f32 %v1325, %v1454
        %v1493 = vadd.f32 %v1326, %v1457
        %v1494 = vadd.f32 %v1327, %v1462
        %v1495 = vadd.f32 %v1328, %v1465
        %v1496 = vadd.f32 %v1329, %v1470
        %v1497 = vadd.f32 %v1330, %v1473
        %v1498 = vadd.f32 %v1331, %v1478
        %v1499 = vadd.f32 %v1332, %v1481
        %v1500 = vld [vmem:[%s1333 + $0x1] sm:$0xff]
        %v1501 = vld [vmem:[%s1333 + $0x9] sm:$0xff]
        %v1502 = vld [vmem:[%s1333 + $0x19] sm:$0xff]
        %v1503 = vld [vmem:[%s1333 + $0x21] sm:$0xff]
        %v1504 = vld [vmem:[%s1333 + $0x31] sm:$0xff]
        %v1505 = vld [vmem:[%s1333 + $0x39] sm:$0xff]
        %v1506 = vld [vmem:[%s1333 + $0x49] sm:$0xff]
        %v1507 = vld [vmem:[%s1333 + $0x51] sm:$0xff]
        %v1508 = vld [vmem:[%s1333 + $0x61] sm:$0xff]
        %v1509 = vld [vmem:[%s1333 + $0x69] sm:$0xff]
        %v1510 = vld [vmem:[%s1333 + $0x79] sm:$0xff]
        %v1511 = vld [vmem:[%s1333 + $0x81] sm:$0xff]
        %v1512 = vld [vmem:[%s1333 + $0x91] sm:$0xff]
        %v1513 = vld [vmem:[%s1333 + $0x99] sm:$0xff]
        %v1514 = vld [vmem:[%s1333 + $0xa9] sm:$0xff]
        %v1515 = vld [vmem:[%s1333 + $0xb1] sm:$0xff]
        %v1516 = vpack.c.bf16 %v1501, %v1500
        %v1517 = vpack.c.bf16 %v1503, %v1502
        %v1518 = vpack.c.bf16 %v1505, %v1504
        %v1519 = vpack.c.bf16 %v1507, %v1506
        %v1520 = vpack.c.bf16 %v1509, %v1508
        %v1521 = vpack.c.bf16 %v1511, %v1510
        %v1522 = vpack.c.bf16 %v1513, %v1512
        %v1523 = vpack.c.bf16 %v1515, %v1514
        %s1524 = scalar_lea.vmem %s2, 14
        %v1525 = vld [vmem:[%s1524] sm:$0x3]
        %v1527 = vsel %vm306, %v1516, 0
        %v1530 = vsel %vm306, %v1517, 0
        %v1533 = vsel %vm306, %v1518, 0
        %v1536 = vsel %vm306, %v1519, 0
        %v1539 = vsel %vm306, %v1520, 0
        %v1542 = vsel %vm306, %v1521, 0
        %v1545 = vsel %vm306, %v1522, 0
        %v1548 = vsel %vm306, %v1523, 0
        %v1551 = vsel %vm444, %v1525, 0
        %1553 = vmatprep.subr.bf16.mxu0 0
        %1554 = vmatpush1.bf16.msra.mxu0 %v1551
        %1555 = vmatprep.subr.bf16.mxu0 0
        %1556 = vmatpush1.bf16.msra.mxu0 0
        %1557 = vmatprep.subr.bf16.mxu0 0
        %1558 = vmatpush1.bf16.msra.mxu0 0
        %1559 = vmatprep.subr.bf16.mxu0 0
        %1560 = vmatpush1.bf16.msra.mxu0 0
        %1561 = vmatprep.subr.bf16.mxu0 0
        %1562 = vmatpush1.bf16.msra.mxu0 0
        %1563 = vmatprep.subr.bf16.mxu0 0
        %1564 = vmatpush1.bf16.msra.mxu0 0
        %1565 = vmatprep.subr.bf16.mxu0 0
        %1566 = vmatpush1.bf16.msra.mxu0 0
        %1567 = vmatprep.subr.bf16.mxu0 0
        %1568 = vmatpush1.bf16.msra.mxu0 0
        %1569 = vmatprep.subr.bf16.mxu0 0
        %1570 = vmatpush1.bf16.msra.mxu0 0
        %1571 = vmatprep.subr.bf16.mxu0 0
        %1572 = vmatpush1.bf16.msra.mxu0 0
        %1573 = vmatprep.subr.bf16.mxu0 0
        %1574 = vmatpush1.bf16.msra.mxu0 0
        %1575 = vmatprep.subr.bf16.mxu0 0
        %1576 = vmatpush1.bf16.msra.mxu0 0
        %1577 = vmatprep.subr.bf16.mxu0 0
        %1578 = vmatpush1.bf16.msra.mxu0 0
        %1579 = vmatprep.subr.bf16.mxu0 0
        %1580 = vmatpush1.bf16.msra.mxu0 0
        %1581 = vmatprep.subr.bf16.mxu0 0
        %1582 = vmatpush1.bf16.msra.mxu0 0
        %1583 = vmatprep.subr.bf16.mxu0 0
        %1584 = vmatpush1.bf16.msra.mxu0 0
        %1585 = vmatprep.mubr.bf16.mxu0 0
        %1586 = vmatmul.mubr.bf16.gmra.mrb[0].mxu0 %v1527
        %v1587 = vpop.f32.mrb[0].mxu0
        %v1588 = vadd.f32 0.0, %v1587
        %v1589 = vpop.f32.mrb[0].mxu0
        %v1590 = vpop.f32.mrb[0].mxu0
        %v1591 = vadd.f32 0.0, %v1590
        %v1592 = vpop.f32.mrb[0].mxu0
        %1593 = vmatprep.mubr.bf16.mxu0 0
        %1594 = vmatmul.mubr.bf16.gmra.mrb[0].mxu0 %v1530
        %v1595 = vpop.f32.mrb[0].mxu0
        %v1596 = vadd.f32 0.0, %v1595
        %v1597 = vpop.f32.mrb[0].mxu0
        %v1598 = vpop.f32.mrb[0].mxu0
        %v1599 = vadd.f32 0.0, %v1598
        %v1600 = vpop.f32.mrb[0].mxu0
        %1601 = vmatprep.mubr.bf16.mxu0 0
        %1602 = vmatmul.mubr.bf16.gmra.mrb[0].mxu0 %v1533
        %v1603 = vpop.f32.mrb[0].mxu0
        %v1604 = vadd.f32 0.0, %v1603
        %v1605 = vpop.f32.mrb[0].mxu0
        %v1606 = vpop.f32.mrb[0].mxu0
        %v1607 = vadd.f32 0.0, %v1606
        %v1608 = vpop.f32.mrb[0].mxu0
        %1609 = vmatprep.mubr.bf16.mxu0 0
        %1610 = vmatmul.mubr.bf16.gmra.mrb[0].mxu0 %v1536
        %v1611 = vpop.f32.mrb[0].mxu0
        %v1612 = vadd.f32 0.0, %v1611
        %v1613 = vpop.f32.mrb[0].mxu0
        %v1614 = vpop.f32.mrb[0].mxu0
        %v1615 = vadd.f32 0.0, %v1614
        %v1616 = vpop.f32.mrb[0].mxu0
        %1617 = vmatprep.mubr.bf16.mxu0 0
        %1618 = vmatmul.mubr.bf16.gmra.mrb[0].mxu0 %v1539
        %v1619 = vpop.f32.mrb[0].mxu0
        %v1620 = vadd.f32 0.0, %v1619
        %v1621 = vpop.f32.mrb[0].mxu0
        %v1622 = vpop.f32.mrb[0].mxu0
        %v1623 = vadd.f32 0.0, %v1622
        %v1624 = vpop.f32.mrb[0].mxu0
        %1625 = vmatprep.mubr.bf16.mxu0 0
        %1626 = vmatmul.mubr.bf16.gmra.mrb[0].mxu0 %v1542
        %v1627 = vpop.f32.mrb[0].mxu0
        %v1628 = vadd.f32 0.0, %v1627
        %v1629 = vpop.f32.mrb[0].mxu0
        %v1630 = vpop.f32.mrb[0].mxu0
        %v1631 = vadd.f32 0.0, %v1630
        %v1632 = vpop.f32.mrb[0].mxu0
        %1633 = vmatprep.mubr.bf16.mxu0 0
        %1634 = vmatmul.mubr.bf16.gmra.mrb[0].mxu0 %v1545
        %v1635 = vpop.f32.mrb[0].mxu0
        %v1636 = vadd.f32 0.0, %v1635
        %v1637 = vpop.f32.mrb[0].mxu0
        %v1638 = vpop.f32.mrb[0].mxu0
        %v1639 = vadd.f32 0.0, %v1638
        %v1640 = vpop.f32.mrb[0].mxu0
        %1641 = vmatprep.mubr.bf16.mxu0 0
        %1642 = vmatmul.mubr.bf16.gmra.mrb[0].mxu0 %v1548
        %v1643 = vpop.f32.mrb[0].mxu0
        %v1644 = vadd.f32 0.0, %v1643
        %v1645 = vpop.f32.mrb[0].mxu0
        %v1646 = vpop.f32.mrb[0].mxu0
        %v1647 = vadd.f32 0.0, %v1646
        %v1648 = vpop.f32.mrb[0].mxu0
        %1649 = vdwg.mxu0
        %v1650 = vadd.f32 %v1484, %v1588
        %v1651 = vadd.f32 %v1485, %v1591
        %v1652 = vadd.f32 %v1486, %v1596
        %v1653 = vadd.f32 %v1487, %v1599
        %v1654 = vadd.f32 %v1488, %v1604
        %v1655 = vadd.f32 %v1489, %v1607
        %v1656 = vadd.f32 %v1490, %v1612
        %v1657 = vadd.f32 %v1491, %v1615
        %v1658 = vadd.f32 %v1492, %v1620
        %v1659 = vadd.f32 %v1493, %v1623
        %v1660 = vadd.f32 %v1494, %v1628
        %v1661 = vadd.f32 %v1495, %v1631
        %v1662 = vadd.f32 %v1496, %v1636
        %v1663 = vadd.f32 %v1497, %v1639
        %v1664 = vadd.f32 %v1498, %v1644
        %v1665 = vadd.f32 %v1499, %v1647
        %v1666 = vld [vmem:[%s1333 + $0x2] sm:$0xff]
        %v1667 = vld [vmem:[%s1333 + $0xa] sm:$0xff]
        %v1668 = vld [vmem:[%s1333 + $0x1a] sm:$0xff]
        %v1669 = vld [vmem:[%s1333 + $0x22] sm:$0xff]
        %v1670 = vld [vmem:[%s1333 + $0x32] sm:$0xff]
        %v1671 = vld [vmem:[%s1333 + $0x3a] sm:$0xff]
        %v1672 = vld [vmem:[%s1333 + $0x4a] sm:$0xff]
        %v1673 = vld [vmem:[%s1333 + $0x52] sm:$0xff]
        %v1674 = vld [vmem:[%s1333 + $0x62] sm:$0xff]
        %v1675 = vld [vmem:[%s1333 + $0x6a] sm:$0xff]
        %v1676 = vld [vmem:[%s1333 + $0x7a] sm:$0xff]
        %v1677 = vld [vmem:[%s1333 + $0x82] sm:$0xff]
        %v1678 = vld [vmem:[%s1333 + $0x92] sm:$0xff]
        %v1679 = vld [vmem:[%s1333 + $0x9a] sm:$0xff]
        %v1680 = vld [vmem:[%s1333 + $0xaa] sm:$0xff]
        %v1681 = vld [vmem:[%s1333 + $0xb2] sm:$0xff]
        %v1682 = vpack.c.bf16 %v1667, %v1666
        %v1683 = vpack.c.bf16 %v1669, %v1668
        %v1684 = vpack.c.bf16 %v1671, %v1670
        %v1685 = vpack.c.bf16 %v1673, %v1672
        %v1686 = vpack.c.bf16 %v1675, %v1674
        %v1687 = vpack.c.bf16 %v1677, %v1676
        %v1688 = vpack.c.bf16 %v1679, %v1678
        %v1689 = vpack.c.bf16 %v1681, %v1680
        %s1690 = scalar_lea.vmem %s2, 16
        %v1691 = vld [vmem:[%s1690] sm:$0x3]
        %v1693 = vsel %vm306, %v1682, 0
        %v1696 = vsel %vm306, %v1683, 0
        %v1699 = vsel %vm306, %v1684, 0
        %v1702 = vsel %vm306, %v1685, 0
        %v1705 = vsel %vm306, %v1686, 0
        %v1708 = vsel %vm306, %v1687, 0
        %v1711 = vsel %vm306, %v1688, 0
        %v1714 = vsel %vm306, %v1689, 0
        %v1717 = vsel %vm444, %v1691, 0
        %1719 = vmatprep.subr.bf16.mxu0 0
        %1720 = vmatpush1.bf16.msra.mxu0 %v1717
        %1721 = vmatprep.subr.bf16.mxu0 0
        %1722 = vmatpush1.bf16.msra.mxu0 0
        %1723 = vmatprep.subr.bf16.mxu0 0
        %1724 = vmatpush1.bf16.msra.mxu0 0
        %1725 = vmatprep.subr.bf16.mxu0 0
        %1726 = vmatpush1.bf16.msra.mxu0 0
        %1727 = vmatprep.subr.bf16.mxu0 0
        %1728 = vmatpush1.bf16.msra.mxu0 0
        %1729 = vmatprep.subr.bf16.mxu0 0
        %1730 = vmatpush1.bf16.msra.mxu0 0
        %1731 = vmatprep.subr.bf16.mxu0 0
        %1732 = vmatpush1.bf16.msra.mxu0 0
        %1733 = vmatprep.subr.bf16.mxu0 0
        %1734 = vmatpush1.bf16.msra.mxu0 0
        %1735 = vmatprep.subr.bf16.mxu0 0
        %1736 = vmatpush1.bf16.msra.mxu0 0
        %1737 = vmatprep.subr.bf16.mxu0 0
        %1738 = vmatpush1.bf16.msra.mxu0 0
        %1739 = vmatprep.subr.bf16.mxu0 0
        %1740 = vmatpush1.bf16.msra.mxu0 0
        %1741 = vmatprep.subr.bf16.mxu0 0
        %1742 = vmatpush1.bf16.msra.mxu0 0
        %1743 = vmatprep.subr.bf16.mxu0 0
        %1744 = vmatpush1.bf16.msra.mxu0 0
        %1745 = vmatprep.subr.bf16.mxu0 0
        %1746 = vmatpush1.bf16.msra.mxu0 0
        %1747 = vmatprep.subr.bf16.mxu0 0
        %1748 = vmatpush1.bf16.msra.mxu0 0
        %1749 = vmatprep.subr.bf16.mxu0 0
        %1750 = vmatpush1.bf16.msra.mxu0 0
        %1751 = vmatprep.mubr.bf16.mxu0 0
        %1752 = vmatmul.mubr.bf16.gmra.mrb[0].mxu0 %v1693
        %v1753 = vpop.f32.mrb[0].mxu0
        %v1754 = vadd.f32 0.0, %v1753
        %v1755 = vpop.f32.mrb[0].mxu0
        %v1756 = vpop.f32.mrb[0].mxu0
        %v1757 = vadd.f32 0.0, %v1756
        %v1758 = vpop.f32.mrb[0].mxu0
        %1759 = vmatprep.mubr.bf16.mxu0 0
        %1760 = vmatmul.mubr.bf16.gmra.mrb[0].mxu0 %v1696
        %v1761 = vpop.f32.mrb[0].mxu0
        %v1762 = vadd.f32 0.0, %v1761
        %v1763 = vpop.f32.mrb[0].mxu0
        %v1764 = vpop.f32.mrb[0].mxu0
        %v1765 = vadd.f32 0.0, %v1764
        %v1766 = vpop.f32.mrb[0].mxu0
        %1767 = vmatprep.mubr.bf16.mxu0 0
        %1768 = vmatmul.mubr.bf16.gmra.mrb[0].mxu0 %v1699
        %v1769 = vpop.f32.mrb[0].mxu0
        %v1770 = vadd.f32 0.0, %v1769
        %v1771 = vpop.f32.mrb[0].mxu0
        %v1772 = vpop.f32.mrb[0].mxu0
        %v1773 = vadd.f32 0.0, %v1772
        %v1774 = vpop.f32.mrb[0].mxu0
        %1775 = vmatprep.mubr.bf16.mxu0 0
        %1776 = vmatmul.mubr.bf16.gmra.mrb[0].mxu0 %v1702
        %v1777 = vpop.f32.mrb[0].mxu0
        %v1778 = vadd.f32 0.0, %v1777
        %v1779 = vpop.f32.mrb[0].mxu0
        %v1780 = vpop.f32.mrb[0].mxu0
        %v1781 = vadd.f32 0.0, %v1780
        %v1782 = vpop.f32.mrb[0].mxu0
        %1783 = vmatprep.mubr.bf16.mxu0 0
        %1784 = vmatmul.mubr.bf16.gmra.mrb[0].mxu0 %v1705
        %v1785 = vpop.f32.mrb[0].mxu0
        %v1786 = vadd.f32 0.0, %v1785
        %v1787 = vpop.f32.mrb[0].mxu0
        %v1788 = vpop.f32.mrb[0].mxu0
        %v1789 = vadd.f32 0.0, %v1788
        %v1790 = vpop.f32.mrb[0].mxu0
        %1791 = vmatprep.mubr.bf16.mxu0 0
        %1792 = vmatmul.mubr.bf16.gmra.mrb[0].mxu0 %v1708
        %v1793 = vpop.f32.mrb[0].mxu0
        %v1794 = vadd.f32 0.0, %v1793
        %v1795 = vpop.f32.mrb[0].mxu0
        %v1796 = vpop.f32.mrb[0].mxu0
        %v1797 = vadd.f32 0.0, %v1796
        %v1798 = vpop.f32.mrb[0].mxu0
        %1799 = vmatprep.mubr.bf16.mxu0 0
        %1800 = vmatmul.mubr.bf16.gmra.mrb[0].mxu0 %v1711
        %v1801 = vpop.f32.mrb[0].mxu0
        %v1802 = vadd.f32 0.0, %v1801
        %v1803 = vpop.f32.mrb[0].mxu0
        %v1804 = vpop.f32.mrb[0].mxu0
        %v1805 = vadd.f32 0.0, %v1804
        %v1806 = vpop.f32.mrb[0].mxu0
        %1807 = vmatprep.mubr.bf16.mxu0 0
        %1808 = vmatmul.mubr.bf16.gmra.mrb[0].mxu0 %v1714
        %v1809 = vpop.f32.mrb[0].mxu0
        %v1810 = vadd.f32 0.0, %v1809
        %v1811 = vpop.f32.mrb[0].mxu0
        %v1812 = vpop.f32.mrb[0].mxu0
        %v1813 = vadd.f32 0.0, %v1812
        %v1814 = vpop.f32.mrb[0].mxu0
        %1815 = vdwg.mxu0
        %v1816 = vadd.f32 %v1650, %v1754
        %v1817 = vadd.f32 %v1651, %v1757
        %v1818 = vadd.f32 %v1652, %v1762
        %v1819 = vadd.f32 %v1653, %v1765
        %v1820 = vadd.f32 %v1654, %v1770
        %v1821 = vadd.f32 %v1655, %v1773
        %v1822 = vadd.f32 %v1656, %v1778
        %v1823 = vadd.f32 %v1657, %v1781
        %v1824 = vadd.f32 %v1658, %v1786
        %v1825 = vadd.f32 %v1659, %v1789
        %v1826 = vadd.f32 %v1660, %v1794
        %v1827 = vadd.f32 %v1661, %v1797
        %v1828 = vadd.f32 %v1662, %v1802
        %v1829 = vadd.f32 %v1663, %v1805
        %v1830 = vadd.f32 %v1664, %v1810
        %v1831 = vadd.f32 %v1665, %v1813
        %v1832 = vld [vmem:[%s3] sm:$0x1]
        %v1834 = vlaneseq
        %v1835 = vshrl.u32 %v1834, 7
        %v1836 = vsub.s32 0, %v1835
        %v1837 = vrot.slane %v1832, %v1836
        %v1839 = vadd.f32 %v1816, %v1837
        %v1840 = vadd.f32 %v1817, %v1837
        %v1841 = vadd.f32 %v1818, %v1837
        %v1842 = vadd.f32 %v1819, %v1837
        %v1843 = vadd.f32 %v1820, %v1837
        %v1844 = vadd.f32 %v1821, %v1837
        %v1845 = vadd.f32 %v1822, %v1837
        %v1846 = vadd.f32 %v1823, %v1837
        %v1847 = vadd.f32 %v1824, %v1837
        %v1848 = vadd.f32 %v1825, %v1837
        %v1849 = vadd.f32 %v1826, %v1837
        %v1850 = vadd.f32 %v1827, %v1837
        %v1851 = vadd.f32 %v1828, %v1837
        %v1852 = vadd.f32 %v1829, %v1837
        %v1853 = vadd.f32 %v1830, %v1837
        %v1854 = vadd.f32 %v1831, %v1837
        %v1855 = vmax.f32 %v1839, 0.0
        %v1856 = vmax.f32 %v1840, 0.0
        %v1857 = vmax.f32 %v1841, 0.0
        %v1858 = vmax.f32 %v1842, 0.0
        %v1859 = vmax.f32 %v1843, 0.0
        %v1860 = vmax.f32 %v1844, 0.0
        %v1861 = vmax.f32 %v1845, 0.0
        %v1862 = vmax.f32 %v1846, 0.0
        %v1863 = vmax.f32 %v1847, 0.0
        %v1864 = vmax.f32 %v1848, 0.0
        %v1865 = vmax.f32 %v1849, 0.0
        %v1866 = vmax.f32 %v1850, 0.0
        %v1867 = vmax.f32 %v1851, 0.0
        %v1868 = vmax.f32 %v1852, 0.0
        %v1869 = vmax.f32 %v1853, 0.0
        %v1870 = vmax.f32 %v1854, 0.0
        %v1871 = vpack.c.bf16 %v1856, %v1855
        %v1872 = vpack.c.bf16 %v1858, %v1857
        %v1873 = vpack.c.bf16 %v1860, %v1859
        %v1874 = vpack.c.bf16 %v1862, %v1861
        %v1875 = vpack.c.bf16 %v1864, %v1863
        %v1876 = vpack.c.bf16 %v1866, %v1865
        %v1877 = vpack.c.bf16 %v1868, %v1867
        %v1878 = vpack.c.bf16 %v1870, %v1869
        %v1887 = vunpack.c.l.b16 %v1871
        %v1888 = vunpack.c.h.b16 %v1871
        %v1889 = vunpack.c.l.b16 %v1872
        %v1890 = vunpack.c.h.b16 %v1872
        %v1891 = vunpack.c.l.b16 %v1873
        %v1892 = vunpack.c.h.b16 %v1873
        %v1893 = vunpack.c.l.b16 %v1874
        %v1894 = vunpack.c.h.b16 %v1874
        %v1895 = vunpack.c.l.b16 %v1875
        %v1896 = vunpack.c.h.b16 %v1875
        %v1897 = vunpack.c.l.b16 %v1876
        %v1898 = vunpack.c.h.b16 %v1876
        %v1899 = vunpack.c.l.b16 %v1877
        %v1900 = vunpack.c.h.b16 %v1877
        %v1901 = vunpack.c.l.b16 %v1878
        %v1902 = vunpack.c.h.b16 %v1878
        %v1903 = vpack.c.b16 %v1887, %v1887
        %v1904 = vpack.c.b16 %v1888, %v1888
        %v1905 = vpack.c.b16 %v1889, %v1889
        %v1906 = vpack.c.b16 %v1890, %v1890
        %v1907 = vpack.c.b16 %v1891, %v1891
        %v1908 = vpack.c.b16 %v1892, %v1892
        %v1909 = vpack.c.b16 %v1893, %v1893
        %v1910 = vpack.c.b16 %v1894, %v1894
        %v1911 = vpack.c.b16 %v1895, %v1895
        %v1912 = vpack.c.b16 %v1896, %v1896
        %v1913 = vpack.c.b16 %v1897, %v1897
        %v1914 = vpack.c.b16 %v1898, %v1898
        %v1915 = vpack.c.b16 %v1899, %v1899
        %v1916 = vpack.c.b16 %v1900, %v1900
        %v1917 = vpack.c.b16 %v1901, %v1901
        %v1918 = vpack.c.b16 %v1902, %v1902
        %1935 = vst [vmem:[%s219] sm:$0xf] %v1903
        %1936 = vst [vmem:[%s219 + $0x4] sm:$0xf] %v1904
        %1937 = vst [vmem:[%s219 + $0x8] sm:$0xf] %v1905
        %1938 = vst [vmem:[%s219 + $0xc] sm:$0xf] %v1906
        %1939 = vst [vmem:[%s219 + $0x10] sm:$0xf] %v1907
        %1940 = vst [vmem:[%s219 + $0x14] sm:$0xf] %v1908
        %1941 = vst [vmem:[%s219 + $0x18] sm:$0xf] %v1909
        %1942 = vst [vmem:[%s219 + $0x1c] sm:$0xf] %v1910
        %1943 = vst [vmem:[%s219 + $0x20] sm:$0xf] %v1911
        %1944 = vst [vmem:[%s219 + $0x24] sm:$0xf] %v1912
        %1945 = vst [vmem:[%s219 + $0x28] sm:$0xf] %v1913
        %1946 = vst [vmem:[%s219 + $0x2c] sm:$0xf] %v1914
        %1947 = vst [vmem:[%s219 + $0x30] sm:$0xf] %v1915
        %1948 = vst [vmem:[%s219 + $0x34] sm:$0xf] %v1916
        %1949 = vst [vmem:[%s219 + $0x38] sm:$0xf] %v1917
        %1950 = vst [vmem:[%s219 + $0x3c] sm:$0xf] %v1918
        %s1951 = sand.u32 %s134, 1
        %s1952 = scalar_lea.sflag [#allocation4], %s1951
        %s1953 = sand.u32 %s134, 1
        %s1954 = smul.addr %s1953, 64
        %s1955 = scalar_lea.vmem [#allocation3], %s1954
        // Predicated region
        $region53: #{tpu_custom_call.1} parent=35 // pred_check
          %p1956 = pneg %p144
        $region54: #{tpu_custom_call.1} parent=35 // pred_check_branch
          %1958 = sbr.rel (%p1956) target = $region56
        $region55: #{tpu_custom_call.1} parent=35 // pred_region
          %s1959 = smul.u32 8, %s23
          %s1961 = ssub.s32 1024, 1024
          %1962 = vsyncadd %s1952, %s1961
          %s1963 = smul.addr %s1959, 2
          %s1964 = smul.addr %s22, 32
          %s1965 = sadd.s32 %s1963, %s1964
          %s1966 = smul.addr %s1965, 64
          %s1967 = scalar_lea.hbm %s4, %s1966
          %s1968 = sshll.u32 %s1955, 4
          %s1969 = int_to_ptr.vmem [resolvable:$true] %s1968
          %1974 = dma.vmem_to_hbm [thread:$0]  %s1969, 1024, %s1967, %s1952, 64, 64, 4
        $region56: #{tpu_custom_call.1} parent=35 // pred_fallthru
          _
      $region36: #{tpu_custom_call.1} parent=5 // pred_fallthru
        _
      %p1975 = scmp.le.s32.totalorder 2, %s13
      // Predicated region
      $region57: #{tpu_custom_call.1} parent=5 // pred_check
        %p1976 = pneg %p1975
      $region58: #{tpu_custom_call.1} parent=5 // pred_check_branch
        %1978 = sbr.rel (%p1976) target = $region60
      $region59: #{tpu_custom_call.1} parent=5 // pred_region
        %s1979 = ssub.s32 %s13, 2
        // Predicated region
        $region61: #{tpu_custom_call.1} parent=59 // pred_check
          %p1980 = pneg %p150
        $region62: #{tpu_custom_call.1} parent=59 // pred_check_branch
          %1982 = sbr.rel (%p1980) target = $region64
        $region63: #{tpu_custom_call.1} parent=59 // pred_region
          %s1983 = sand.u32 %s135, 1
          %s1984 = scalar_lea.sflag [#allocation4], %s1983
          %s1985 = sand.u32 %s135, 1
          %s1986 = smul.addr %s1985, 64
          %s1987 = scalar_lea.vmem [#allocation3], %s1986
          %1988 = dma.done %s1984, 1024
        $region64: #{tpu_custom_call.1} parent=59 // pred_fallthru
          _
      $region60: #{tpu_custom_call.1} parent=5 // pred_fallthru
        _
    $region6: #{tpu_custom_call.1} parent=1 // loop_footer
      %s17 = sadd.s32 1, %s13
    $region7: #{tpu_custom_call.1} parent=1 // loop_footer_branch
      %12 = sbr.rel target = $region3
    $region8: #{tpu_custom_call.1} parent=1 // loop_exit
      _
    %1989 = vsyncpa [#allocation4], 1
    %s1990 = scalar_lea.sflag [#allocation4], 1
    %1991 = vsyncpa %s1990, 1

</llo_original>
